<compile_context>
chip_gen: v7x
topology: tpu7x:2x2x1
jax: 0.10.0
libtpu: 0.0.40
codegen_flags: <defaults>
</compile_context>

<pallas_src>
import functools

import jax
import jax.numpy as jnp
from jax.experimental import pallas as pl
from jax.experimental.pallas import tpu as pltpu

EPS = 1e-5          # nn.InstanceNorm2d default eps
C_ALIGN = 8         # sublane alignment for channel dims
CK_ALIGN = 16       # contraction-dim alignment (bf16 sublane packing)
# TODO(synk): for production channel counts (C >= 64) align CK / C_out to the
# MXU width (128 on v5e, 256 on v6e/v7x); at tiny C that padding would inflate
# HBM traffic for no matmul win, so 8/16 alignment is used here.


def _round_up(x, m):
    return (x + m - 1) // m * m


# ---------------------------------------------------------------------------
# Pallas kernel: fused conv(1x5 as matmul) + InstanceNorm2d + residual + ReLU
# ---------------------------------------------------------------------------
def _meshconv_in_res_relu_kernel(*refs, e_total, e_pad, e_tile, add_residual):
    if add_residual:
        g_ref, w_ref, res_ref, o_ref, sum_ref, sq_ref = refs
    else:
        g_ref, w_ref, o_ref, sum_ref, sq_ref = refs
        res_ref = None

    t = pl.program_id(2)

    @pl.when(t == 0)
    def _init():
        sum_ref[...] = jnp.zeros_like(sum_ref)
        sq_ref[...] = jnp.zeros_like(sq_ref)

    # MeshConv 1x5 conv == matmul on the MXU:
    # (C_out_tile, CK) @ (CK, E_tile) -> (C_out_tile, E_tile), bf16 in, f32 acc.
    y = jnp.dot(w_ref[...], g_ref[0], preferred_element_type=jnp.float32)

    # One-pass InstanceNorm statistics.  Accumulate per-tile partials into a
    # 128-lane slab with pure VALU adds (static 128-lane chunks); the cross-lane
    # XLU reduction happens only once, in the finalize step.
    n_chunks = e_tile // 128
    s = y[:, 0:128]
    q = s * s
    for c in range(1, n_chunks):
        chunk = y[:, c * 128:(c + 1) * 128]
        s = s + chunk
        q = q + chunk * chunk
    sum_ref[...] += s
    sq_ref[...] += q

    # Stash the un-normalized tile (bf16) into the resident output block.
    off = pl.multiple_of(t * e_tile, e_tile)
    o_ref[0, :, pl.ds(off, e_tile)] = y.astype(o_ref.dtype)

    @pl.when(t == pl.num_programs(2) - 1)
    def _finalize():
        inv_n = 1.0 / float(e_total)                     # real edge count
        mean = jnp.sum(sum_ref[...], axis=-1, keepdims=True) * inv_n
        ex2 = jnp.sum(sq_ref[...], axis=-1, keepdims=True) * inv_n
        var = jnp.maximum(ex2 - mean * mean, 0.0)        # biased variance
        # TODO(synk): one-pass variance can cancel catastrophically if
        # mean^2 >> var at very large E; switch to a shifted accumulation if
        # activations grow.
        inv_std = jax.lax.rsqrt(var + EPS)               # EUP slot
        out = (o_ref[0].astype(jnp.float32) - mean) * inv_std
        if add_residual:
            out = out + res_ref[0].astype(jnp.float32)
        out = jnp.maximum(out, 0.0)
        if e_pad > e_total:
            # Zero the padded E columns so they never leak non-zero values into
            # the next block's gather / statistics.
            lane = jax.lax.broadcasted_iota(jnp.int32, out.shape, 1)
            out = jnp.where(lane < e_total, out, 0.0)
        o_ref[0] = out.astype(o_ref.dtype)


# ---------------------------------------------------------------------------
# Tiling policy + VMEM budgeting
# ---------------------------------------------------------------------------
def _pick_e_tile(e, ckp, c_outp, budget_bytes=24 << 20):
    """Prefer wide (>=512) lane tiles; small E gets a single 128-aligned tile."""
    if e <= 512:
        return _round_up(e, 128)
    for te in (2048, 1024, 512):
        ep = _round_up(e, te)
        # double-buffered g tile + resident out/res slabs (bf16)
        need = 2 * ckp * te * 2 + 4 * c_outp * ep * 2
        if need <= budget_bytes:
            return te
    return 512


def _pick_c_out_tile(c_outp, e_pad, budget_bytes=16 << 20):
    """Shrink the resident (c_out_tile, E) output + residual footprint."""
    ct = c_outp
    while ct >= 32 and (ct // 2) % 16 == 0 and 4 * ct * e_pad * 2 > budget_bytes:
        ct //= 2
    return ct


def _vmem_limit_bytes(need_bytes):
    cap = 128 << 20
    try:
        cap = int(pltpu.get_tpu_info().vmem_capacity_bytes)
    except Exception:
        pass  # fall back to the most common (v5e/v6e) physical size
    return int(min(max(need_bytes + (2 << 20), 16 << 20), int(0.8 * cap)))


def meshconv_in_res_relu(g, w, res=None, *, e_total, e_tile, c_out_tile=None):
    """g: (B, CKp, Ep) bf16, w: (C_outp, CKp) bf16, res: (B, C_outp, Ep) or None.

    Returns (B, C_outp, Ep) bf16.  e_total is the real (un-padded) edge count.
    """
    B, ckp, e_pad = g.shape
    c_outp = w.shape[0]
    assert e_tile % 128 == 0 and e_pad % e_tile == 0, (e_pad, e_tile)
    n_et = e_pad // e_tile
    ct = c_out_tile if c_out_tile is not None else _pick_c_out_tile(c_outp, e_pad)
    assert c_outp % ct == 0 and ct % C_ALIGN == 0, (c_outp, ct)
    n_co = c_outp // ct
    add_res = res is not None
    if add_res and res.dtype != jnp.bfloat16:
        res = res.astype(jnp.bfloat16)

    kernel = functools.partial(
        _meshconv_in_res_relu_kernel,
        e_total=e_total, e_pad=e_pad, e_tile=e_tile, add_residual=add_res)

    in_specs = [
        # g dominates HBM traffic (CK = 5*C rows): E-tiled + streamed.
        # (If xprof shows exposed DMA here, add pipeline_mode=pl.Buffered(3).)
        pl.BlockSpec((1, ckp, e_tile), lambda b, co, t: (b, 0, t)),
        pl.BlockSpec((ct, ckp), lambda b, co, t: (co, 0)),       # weight slab
    ]
    args = [g, w]
    if add_res:
        # Residual is read only at the finalize step; resident per (b, co).
        # TODO(synk): single-buffer it (pipeline_mode=pl.Buffered(1)) or extract
        # it from g's f0 rows (stride-5 sublane slice) to drop this HBM read.
        in_specs.append(pl.BlockSpec((1, ct, e_pad), lambda b, co, t: (b, co, 0)))
        args.append(res)

    # Honest VMEM accounting (bf16 everywhere at the HBM boundary).
    need = (2 * ckp * e_tile * 2            # g tile, double-buffered
            + 2 * ct * ckp * 2              # weight slab, double-buffered
            + 2 * ct * e_pad * 2            # resident output block
            + (2 * ct * e_pad * 2 if add_res else 0)
            + 2 * ct * 128 * 4)             # stats scratch (f32)
    vmem_limit = _vmem_limit_bytes(need)

    return pl.pallas_call(
        kernel,
        out_shape=jax.ShapeDtypeStruct((B, c_outp, e_pad), jnp.bfloat16),
        grid=(B, n_co, n_et),
        in_specs=in_specs,
        out_specs=pl.BlockSpec((1, ct, e_pad), lambda b, co, t: (b, co, 0)),
        scratch_shapes=[pltpu.VMEM((ct, 128), jnp.float32),   # sum(y) partials
                        pltpu.VMEM((ct, 128), jnp.float32)],  # sum(y*y) partials
        compiler_params=pltpu.CompilerParams(
            dimension_semantics=("parallel", "parallel", "arbitrary"),
            vmem_limit_bytes=vmem_limit),
    )(*args)


# ---------------------------------------------------------------------------
# Plain-JAX reference of the fused op (f32 activations) for checking
# ---------------------------------------------------------------------------
def meshconv_reference(g, w, res=None):
    y = jnp.einsum("ok,bke->boe", w, g, preferred_element_type=jnp.float32)
    mean = jnp.mean(y, axis=2, keepdims=True)
    var = jnp.mean(jnp.square(y - mean), axis=2, keepdims=True)
    y = (y - mean) * jax.lax.rsqrt(var + EPS)
    if res is not None:
        y = y + res
    return jnp.maximum(y, 0.0)


# ---------------------------------------------------------------------------
# Plain-JAX glue: MeshConv's pad_gemm / create_GeMM, transpose-free layout
# ---------------------------------------------------------------------------
def build_gemm(fe, gemm_edges):
    """fe: (B, C, E) float, gemm_edges: (E, 4) int32 -> (B, CKp, E) bf16.

    The 5-neighborhood is gathered along E, symmetric functions applied per
    channel, and (c, k) flattened onto the sublane axis (c outer, k inner),
    matching a Conv2d weight (C_out, C_in, 1, 5) flattened to (C_out, C_in*5).
    Padded rows of gemm_edges must be -1 and padded fe columns zero so that
    padded E columns of g stay exactly zero.
    """
    B, C, E = fe.shape
    # pad_gemm: the edge itself first, then its 4 one-ring neighbors; +1 shift
    # so index 0 selects the zero padding column (MeshCNN pads missing
    # neighbors with -1).
    gi = jnp.concatenate(
        [jnp.arange(E, dtype=jnp.int32)[:, None], gemm_edges], axis=1) + 1  # (E,5)
    xpad = jnp.concatenate([jnp.zeros((B, C, 1), fe.dtype), fe], axis=2)    # (B,C,E+1)
    f = jnp.take(xpad, gi.T, axis=2)                                        # (B,C,5,E)
    f0, f1, f2, f3, f4 = (f[:, :, k, :] for k in range(5))
    g = jnp.stack([f0, f1 + f3, f2 + f4,
                   jnp.abs(f1 - f3), jnp.abs(f2 - f4)], axis=2)             # (B,C,5,E)
    g = g.reshape(B, C * 5, E).astype(jnp.bfloat16)                         # MXU operand
    ckp = _round_up(C * 5, CK_ALIGN)
    if ckp > C * 5:
        g = jnp.pad(g, ((0, 0), (0, ckp - C * 5), (0, 0)))
    # TODO(synk): fuse this gather + symmetric functions into the Pallas kernel
    # (scalar-prefetch gemm_edges, manual DMA gather from HBM) so activations
    # never round-trip HBM 5x-expanded between residual blocks.
    return g


def flatten_conv_weight(w, c_in_pad, c_out_pad):
    """w: (C_out, C_in, 1, 5) torch-layout conv weight -> (C_out_pad, CKp) bf16."""
    c_out, c_in = w.shape[0], w.shape[1]
    w = w.reshape(c_out, c_in, 5)
    w = jnp.pad(w, ((0, c_out_pad - c_out), (0, c_in_pad - c_in), (0, 0)))
    ck = c_in_pad * 5
    ckp = _round_up(ck, CK_ALIGN)
    w = w.reshape(c_out_pad, ck)
    if ckp > ck:
        w = jnp.pad(w, ((0, 0), (0, ckp - ck)))
    return w.astype(jnp.bfloat16)


def init_params(key, in_channels, out_channels, blocks):
    """Conv2d weights in torch layout (C_out, C_in, 1, 5).  The conv bias is
    omitted: InstanceNorm2d(affine=False) subtracts the per-channel mean, which
    cancels it exactly, so it would be dead compute."""
    c_in_p = _round_up(in_channels, C_ALIGN)
    c_out_p = _round_up(out_channels, C_ALIGN)
    keys = jax.random.split(key, blocks + 1)

    def conv(k, cin, cin_p, cout, cout_p):
        w = jax.random.normal(k, (cout, cin, 1, 5), jnp.float32) * 0.1
        return flatten_conv_weight(w, cin_p, cout_p)

    return {
        "c_in": in_channels, "c_in_pad": c_in_p,
        "c_out": out_channels, "c_out_pad": c_out_p,
        "conv1": conv(keys[0], in_channels, c_in_p, out_channels, c_out_p),
        "conv2": [conv(keys[i + 1], out_channels, c_out_p, out_channels, c_out_p)
                  for i in range(blocks)],
    }


# ---------------------------------------------------------------------------
# DownConv forward (residual block stack, pool=0)
# ---------------------------------------------------------------------------
def down_conv_forward(fe, gemm_edges, params, use_pallas=True, e_tile=None):
    """fe: (B, C_in, E) f32.  Returns (x2, before_pool) like the PyTorch module,
    with x2: (B, C_out, E) f32 (== x2.squeeze(3) layout)."""
    B, _, E = fe.shape
    c_in_p, c_out_p = params["c_in_pad"], params["c_out_pad"]

    # Zero-pad channels once up front; padded channels stay exactly zero
    # through the whole residual chain (zero weight rows/cols).
    if fe.shape[1] < c_in_p:
        fe = jnp.pad(fe, ((0, 0), (0, c_in_p - fe.shape[1]), (0, 0)))

    if use_pallas:
        ckp_max = _round_up(max(c_in_p, c_out_p) * 5, CK_ALIGN)
        te = e_tile if e_tile is not None else _pick_e_tile(E, ckp_max, c_out_p)
        e_pad = _round_up(E, te)
        if e_pad > E:
            # Pad E for clean lane tiling: zero activation columns + '-1' edge
            # rows so padded g columns are exactly zero and the kernel's
            # e_total-based statistics stay exact.
            fe = jnp.pad(fe, ((0, 0), (0, 0), (0, e_pad - E)))
            gemm_edges = jnp.pad(gemm_edges, ((0, e_pad - E), (0, 0)),
                                 constant_values=-1)
        conv_fn = functools.partial(meshconv_in_res_relu, e_total=E, e_tile=te)
    else:
        conv_fn = meshconv_reference

    # x1 = relu(InstanceNorm(conv1(fe)))      (no residual)
    g = build_gemm(fe, gemm_edges)                         # (B, CKp, Ep) bf16
    x1 = conv_fn(g, params["conv1"], None)                 # (B, C_out_pad, Ep)

    # residual blocks: x2 = relu(InstanceNorm(conv2[i](x1)) + x1)
    x2 = x1
    for w in params["conv2"]:
        g = build_gemm(x1, gemm_edges)
        x2 = conv_fn(g, w, x1)
        x1 = x2

    # Drop channel / edge padding, restore the module's f32 output dtype.
    x2 = x2[:, :params["c_out"], :E].astype(jnp.float32)
    before_pool = None
    # TODO(synk): MeshPool (priority-queue edge collapse with data-dependent
    # mesh rewrites) has no clean Pallas equivalent; only the pool=0 path is
    # implemented (before_pool stays None, matching pool=0).
    return x2, before_pool


if __name__ == "__main__":
    # E deliberately not a multiple of 128 to exercise the padded-E path.
    B, C_in, C_out, E, BLOCKS = 2, 4, 8, 250, 1

    key = jax.random.PRNGKey(0)
    k_fe, k_par = jax.random.split(key)

    fe = jax.random.normal(k_fe, (B, C_in, E), jnp.float32)          # (B, C_in, E)

    # synthetic mesh: ring connectivity, 4 one-ring neighbors per edge
    e = jnp.arange(E, dtype=jnp.int32)
    gemm_edges = jnp.stack(
        [(e - 1) % E, (e + 1) % E, (e - 2) % E, (e + 2) % E], axis=1)  # (E, 4)

    params = init_params(k_par, C_in, C_out, BLOCKS)

    # Plain-JAX f32 reference of the same computation.
    x2_ref, _ = down_conv_forward(fe, gemm_edges, params, use_pallas=False)

    # Pallas, explicit 128-wide E tiles: E=250 -> padded to 256, 2 tiles per
    # batch element, exercising cross-tile statistics accumulation + masking.
    fwd = jax.jit(lambda f, ge: down_conv_forward(f, ge, params,
                                                  use_pallas=True, e_tile=128))
    x2, before_pool = fwd(fe, gemm_edges)
    jax.block_until_ready(x2)
    assert x2.shape == (B, C_out, E), x2.shape
    err = float(jnp.max(jnp.abs(x2 - x2_ref)))
    assert jnp.allclose(x2, x2_ref, atol=8e-2, rtol=8e-2), err

    # Pallas, automatic tile policy (single 256-wide tile; padded-E mask path).
    fwd_auto = jax.jit(lambda f, ge: down_conv_forward(f, ge, params,
                                                       use_pallas=True))
    x2b, _ = fwd_auto(fe, gemm_edges)
    jax.block_until_ready(x2b)
    err_b = float(jnp.max(jnp.abs(x2b - x2_ref)))
    assert jnp.allclose(x2b, x2_ref, atol=8e-2, rtol=8e-2), err_b

    print("KERNEL_OK")
</pallas_src>

<mosaic_0001>
module attributes {stable_mosaic.version = 11 : i64} {
  func.func @_meshconv_in_res_relu_kernel(%arg0: i32, %arg1: i32, %arg2: i32, %arg3: memref<1x48x128xbf16, #tpu.memory_space<vmem>>, %arg4: memref<8x48xbf16, #tpu.memory_space<vmem>>, %arg5: memref<1x8x256xbf16, #tpu.memory_space<vmem>>, %arg6: memref<8x128xf32, #tpu.memory_space<vmem>>, %arg7: memref<8x128xf32, #tpu.memory_space<vmem>>) attributes {dimension_semantics = [#tpu.dimension_semantics<parallel>, #tpu.dimension_semantics<parallel>, #tpu.dimension_semantics<arbitrary>], iteration_bounds = array<i64: 2, 1, 2>, scalar_prefetch = 0 : i64, scratch_operands = 2 : i64, tpu.core_type = #tpu.core_type<tc>, window_params = [{transform_indices = @transform_0, window_bounds = array<i64: 1, 48, 128>}, {transform_indices = @transform_1, window_bounds = array<i64: 8, 48>}, {transform_indices = @transform_2, window_bounds = array<i64: 1, 8, 256>}]} {
    %c0_i32 = arith.constant 0 : i32
    %0 = arith.cmpi eq, %arg2, %c0_i32 : i32
    %1 = arith.extui %0 : i1 to i32
    %c0_i32_0 = arith.constant 0 : i32
    %2 = arith.cmpi ne, %1, %c0_i32_0 : i32
    scf.if %2 {
      %cst_16 = arith.constant 0.000000e+00 : f32
      %24 = vector.broadcast %cst_16 : f32 to vector<8x128xf32>
      %c0_17 = arith.constant 0 : index
      %c0_18 = arith.constant 0 : index
      %25 = vector.load %arg6[%c0_17, %c0_18] : memref<8x128xf32, #tpu.memory_space<vmem>>, vector<8x128xf32>
      tpu.vector_store %arg6[%c0_17, %c0_18], %24 {strides = array<i32>} : memref<8x128xf32, #tpu.memory_space<vmem>>, vector<8x128xf32>,
      %cst_19 = arith.constant 0.000000e+00 : f32
      %26 = vector.broadcast %cst_19 : f32 to vector<8x128xf32>
      %c0_20 = arith.constant 0 : index
      %c0_21 = arith.constant 0 : index
      %27 = vector.load %arg7[%c0_20, %c0_21] : memref<8x128xf32, #tpu.memory_space<vmem>>, vector<8x128xf32>
      tpu.vector_store %arg7[%c0_20, %c0_21], %26 {strides = array<i32>} : memref<8x128xf32, #tpu.memory_space<vmem>>, vector<8x128xf32>,
    } else {
    }
    %c0 = arith.constant 0 : index
    %c0_1 = arith.constant 0 : index
    %3 = vector.load %arg4[%c0, %c0_1] : memref<8x48xbf16, #tpu.memory_space<vmem>>, vector<8x48xbf16>
    %c0_2 = arith.constant 0 : index
    %c0_3 = arith.constant 0 : index
    %c0_4 = arith.constant 0 : index
    %4 = vector.load %arg3[%c0_2, %c0_3, %c0_4] : memref<1x48x128xbf16, #tpu.memory_space<vmem>>, vector<1x48x128xbf16>
    %5 = vector.shape_cast %4 : vector<1x48x128xbf16> to vector<48x128xbf16>
    %cst = arith.constant dense<0.000000e+00> : vector<8x128xf32>
    %6 = tpu.matmul %3, %5, %cst {dimension_numbers = #tpu.dot_dimension_numbers<[1], [0], [0], [1], [0, 0, 1, 1], [], []>} : vector<8x48xbf16>, vector<48x128xbf16>, vector<8x128xf32> -> vector<8x128xf32>
    %7 = arith.mulf %6, %6 : vector<8x128xf32>
    %c0_5 = arith.constant 0 : index
    %c0_6 = arith.constant 0 : index
    %8 = vector.load %arg6[%c0_5, %c0_6] : memref<8x128xf32, #tpu.memory_space<vmem>>, vector<8x128xf32>
    %9 = arith.addf %8, %6 : vector<8x128xf32>
    %c0_7 = arith.constant 0 : index
    %c0_8 = arith.constant 0 : index
    %10 = vector.load %arg6[%c0_7, %c0_8] : memref<8x128xf32, #tpu.memory_space<vmem>>, vector<8x128xf32>
    tpu.vector_store %arg6[%c0_7, %c0_8], %9 {strides = array<i32>} : memref<8x128xf32, #tpu.memory_space<vmem>>, vector<8x128xf32>,
    %c0_9 = arith.constant 0 : index
    %c0_10 = arith.constant 0 : index
    %11 = vector.load %arg7[%c0_9, %c0_10] : memref<8x128xf32, #tpu.memory_space<vmem>>, vector<8x128xf32>
    %12 = arith.addf %11, %7 : vector<8x128xf32>
    %c0_11 = arith.constant 0 : index
    %c0_12 = arith.constant 0 : index
    %13 = vector.load %arg7[%c0_11, %c0_12] : memref<8x128xf32, #tpu.memory_space<vmem>>, vector<8x128xf32>
    tpu.vector_store %arg7[%c0_11, %c0_12], %12 {strides = array<i32>} : memref<8x128xf32, #tpu.memory_space<vmem>>, vector<8x128xf32>,
    %c128_i32 = arith.constant 128 : i32
    %14 = arith.muli %arg2, %c128_i32 : i32
    %15 = tpu.assume_multiple %14, 128 : i32
    %16 = arith.truncf %6 : vector<8x128xf32> to vector<8x128xbf16>
    %c0_13 = arith.constant 0 : index
    %c0_14 = arith.constant 0 : index
    %17 = arith.index_cast %15 : i32 to index
    %18 = vector.load %arg5[%c0_13, %c0_14, %17] : memref<1x8x256xbf16, #tpu.memory_space<vmem>>, vector<1x8x128xbf16>
    %19 = vector.shape_cast %18 : vector<1x8x128xbf16> to vector<8x128xbf16>
    %20 = vector.shape_cast %16 : vector<8x128xbf16> to vector<1x8x128xbf16>
    tpu.vector_store %arg5[%c0_13, %c0_14, %17], %20 {strides = array<i32>} : memref<1x8x256xbf16, #tpu.memory_space<vmem>>, vector<1x8x128xbf16>,
    %c1_i32 = arith.constant 1 : i32
    %21 = arith.cmpi eq, %arg2, %c1_i32 : i32
    %22 = arith.extui %21 : i1 to i32
    %c0_i32_15 = arith.constant 0 : i32
    %23 = arith.cmpi ne, %22, %c0_i32_15 : i32
    scf.if %23 {
      %c0_16 = arith.constant 0 : index
      %c0_17 = arith.constant 0 : index
      %24 = vector.load %arg6[%c0_16, %c0_17] : memref<8x128xf32, #tpu.memory_space<vmem>>, vector<8x128xf32>
      %cst_18 = arith.constant dense<0.000000e+00> : vector<8xf32>
      %25 = vector.multi_reduction <add>, %24, %cst_18 [1] : vector<8x128xf32> to vector<8xf32>
      %26 = vector.shape_cast %25 : vector<8xf32> to vector<8x1xf32>
      %cst_19 = arith.constant 4.000000e-03 : f32
      %27 = vector.broadcast %cst_19 : f32 to vector<8x1xf32>
      %28 = arith.mulf %26, %27 : vector<8x1xf32>
      %c0_20 = arith.constant 0 : index
      %c0_21 = arith.constant 0 : index
      %29 = vector.load %arg7[%c0_20, %c0_21] : memref<8x128xf32, #tpu.memory_space<vmem>>, vector<8x128xf32>
      %cst_22 = arith.constant dense<0.000000e+00> : vector<8xf32>
      %30 = vector.multi_reduction <add>, %29, %cst_22 [1] : vector<8x128xf32> to vector<8xf32>
      %31 = vector.shape_cast %30 : vector<8xf32> to vector<8x1xf32>
      %cst_23 = arith.constant 4.000000e-03 : f32
      %32 = vector.broadcast %cst_23 : f32 to vector<8x1xf32>
      %33 = arith.mulf %31, %32 : vector<8x1xf32>
      %34 = arith.mulf %28, %28 : vector<8x1xf32>
      %35 = arith.subf %33, %34 : vector<8x1xf32>
      %cst_24 = arith.constant 0.000000e+00 : f32
      %36 = vector.broadcast %cst_24 : f32 to vector<8x1xf32>
      %37 = arith.maximumf %35, %36 : vector<8x1xf32>
      %cst_25 = arith.constant 9.99999974E-6 : f32
      %38 = vector.broadcast %cst_25 : f32 to vector<8x1xf32>
      %39 = arith.addf %37, %38 : vector<8x1xf32>
      %40 = math.rsqrt %39 : vector<8x1xf32>
      %c0_26 = arith.constant 0 : index
      %c0_27 = arith.constant 0 : index
      %c0_28 = arith.constant 0 : index
      %41 = vector.load %arg5[%c0_26, %c0_27, %c0_28] : memref<1x8x256xbf16, #tpu.memory_space<vmem>>, vector<1x8x256xbf16>
      %42 = vector.shape_cast %41 : vector<1x8x256xbf16> to vector<8x256xbf16>
      %43 = arith.extf %42 : vector<8x256xbf16> to vector<8x256xf32>
      %44 = vector.broadcast %28 : vector<8x1xf32> to vector<8x256xf32>
      %45 = arith.subf %43, %44 : vector<8x256xf32>
      %46 = vector.broadcast %40 : vector<8x1xf32> to vector<8x256xf32>
      %47 = arith.mulf %45, %46 : vector<8x256xf32>
      %cst_29 = arith.constant 0.000000e+00 : f32
      %48 = vector.broadcast %cst_29 : f32 to vector<8x256xf32>
      %49 = arith.maximumf %47, %48 : vector<8x256xf32>
      %50 = tpu.iota {dimensions = array<i32: 1>} : vector<8x256xi32>
      %c250_i32 = arith.constant 250 : i32
      %51 = vector.broadcast %c250_i32 : i32 to vector<8x256xi32>
      %52 = arith.cmpi slt, %50, %51 : vector<8x256xi32>
      %cst_30 = arith.constant 0.000000e+00 : f32
      %53 = vector.broadcast %cst_30 : f32 to vector<8x256xf32>
      %54 = arith.select %52, %49, %53 : vector<8x256xi1>, vector<8x256xf32>
      %55 = arith.truncf %54 : vector<8x256xf32> to vector<8x256xbf16>
      %c0_31 = arith.constant 0 : index
      %c0_32 = arith.constant 0 : index
      %c0_33 = arith.constant 0 : index
      %56 = vector.load %arg5[%c0_31, %c0_32, %c0_33] : memref<1x8x256xbf16, #tpu.memory_space<vmem>>, vector<1x8x256xbf16>
      %57 = vector.shape_cast %56 : vector<1x8x256xbf16> to vector<8x256xbf16>
      %58 = vector.shape_cast %55 : vector<8x256xbf16> to vector<1x8x256xbf16>
      tpu.vector_store %arg5[%c0_31, %c0_32, %c0_33], %58 {strides = array<i32>} : memref<1x8x256xbf16, #tpu.memory_space<vmem>>, vector<1x8x256xbf16>,
    } else {
    }
    return
  }
  func.func @transform_0(%arg0: i32, %arg1: i32, %arg2: i32) -> (i32, i32, i32) {
    %c0_i32 = arith.constant 0 : i32
    %c0_i32_0 = arith.constant 0 : i32
    return %arg0, %c0_i32, %arg2 : i32, i32, i32
  }
  func.func @transform_1(%arg0: i32, %arg1: i32, %arg2: i32) -> (i32, i32) {
    %c0_i32 = arith.constant 0 : i32
    %c0_i32_0 = arith.constant 0 : i32
    return %arg1, %c0_i32 : i32, i32
  }
  func.func @transform_2(%arg0: i32, %arg1: i32, %arg2: i32) -> (i32, i32, i32) {
    %c0_i32 = arith.constant 0 : i32
    %c0_i32_0 = arith.constant 0 : i32
    return %arg0, %arg1, %c0_i32 : i32, i32, i32
  }
}

module attributes {stable_mosaic.version = 11 : i64} {
  func.func @_meshconv_in_res_relu_kernel(%arg0: i32, %arg1: i32, %arg2: i32, %arg3: memref<1x48x128xbf16, #tpu.memory_space<vmem>>, %arg4: memref<8x48xbf16, #tpu.memory_space<vmem>>, %arg5: memref<1x8x256xbf16, #tpu.memory_space<vmem>>, %arg6: memref<1x8x256xbf16, #tpu.memory_space<vmem>>, %arg7: memref<8x128xf32, #tpu.memory_space<vmem>>, %arg8: memref<8x128xf32, #tpu.memory_space<vmem>>) attributes {dimension_semantics = [#tpu.dimension_semantics<parallel>, #tpu.dimension_semantics<parallel>, #tpu.dimension_semantics<arbitrary>], iteration_bounds = array<i64: 2, 1, 2>, scalar_prefetch = 0 : i64, scratch_operands = 2 : i64, tpu.core_type = #tpu.core_type<tc>, window_params = [{transform_indices = @transform_0, window_bounds = array<i64: 1, 48, 128>}, {transform_indices = @transform_1, window_bounds = array<i64: 8, 48>}, {transform_indices = @transform_2, window_bounds = array<i64: 1, 8, 256>}, {transform_indices = @transform_3, window_bounds = array<i64: 1, 8, 256>}]} {
    %c0_i32 = arith.constant 0 : i32
    %0 = arith.cmpi eq, %arg2, %c0_i32 : i32
    %1 = arith.extui %0 : i1 to i32
    %c0_i32_0 = arith.constant 0 : i32
    %2 = arith.cmpi ne, %1, %c0_i32_0 : i32
    scf.if %2 {
      %cst_16 = arith.constant 0.000000e+00 : f32
      %24 = vector.broadcast %cst_16 : f32 to vector<8x128xf32>
      %c0_17 = arith.constant 0 : index
      %c0_18 = arith.constant 0 : index
      %25 = vector.load %arg7[%c0_17, %c0_18] : memref<8x128xf32, #tpu.memory_space<vmem>>, vector<8x128xf32>
      tpu.vector_store %arg7[%c0_17, %c0_18], %24 {strides = array<i32>} : memref<8x128xf32, #tpu.memory_space<vmem>>, vector<8x128xf32>,
      %cst_19 = arith.constant 0.000000e+00 : f32
      %26 = vector.broadcast %cst_19 : f32 to vector<8x128xf32>
      %c0_20 = arith.constant 0 : index
      %c0_21 = arith.constant 0 : index
      %27 = vector.load %arg8[%c0_20, %c0_21] : memref<8x128xf32, #tpu.memory_space<vmem>>, vector<8x128xf32>
      tpu.vector_store %arg8[%c0_20, %c0_21], %26 {strides = array<i32>} : memref<8x128xf32, #tpu.memory_space<vmem>>, vector<8x128xf32>,
    } else {
    }
    %c0 = arith.constant 0 : index
    %c0_1 = arith.constant 0 : index
    %3 = vector.load %arg4[%c0, %c0_1] : memref<8x48xbf16, #tpu.memory_space<vmem>>, vector<8x48xbf16>
    %c0_2 = arith.constant 0 : index
    %c0_3 = arith.constant 0 : index
    %c0_4 = arith.constant 0 : index
    %4 = vector.load %arg3[%c0_2, %c0_3, %c0_4] : memref<1x48x128xbf16, #tpu.memory_space<vmem>>, vector<1x48x128xbf16>
    %5 = vector.shape_cast %4 : vector<1x48x128xbf16> to vector<48x128xbf16>
    %cst = arith.constant dense<0.000000e+00> : vector<8x128xf32>
    %6 = tpu.matmul %3, %5, %cst {dimension_numbers = #tpu.dot_dimension_numbers<[1], [0], [0], [1], [0, 0, 1, 1], [], []>} : vector<8x48xbf16>, vector<48x128xbf16>, vector<8x128xf32> -> vector<8x128xf32>
    %7 = arith.mulf %6, %6 : vector<8x128xf32>
    %c0_5 = arith.constant 0 : index
    %c0_6 = arith.constant 0 : index
    %8 = vector.load %arg7[%c0_5, %c0_6] : memref<8x128xf32, #tpu.memory_space<vmem>>, vector<8x128xf32>
    %9 = arith.addf %8, %6 : vector<8x128xf32>
    %c0_7 = arith.constant 0 : index
    %c0_8 = arith.constant 0 : index
    %10 = vector.load %arg7[%c0_7, %c0_8] : memref<8x128xf32, #tpu.memory_space<vmem>>, vector<8x128xf32>
    tpu.vector_store %arg7[%c0_7, %c0_8], %9 {strides = array<i32>} : memref<8x128xf32, #tpu.memory_space<vmem>>, vector<8x128xf32>,
    %c0_9 = arith.constant 0 : index
    %c0_10 = arith.constant 0 : index
    %11 = vector.load %arg8[%c0_9, %c0_10] : memref<8x128xf32, #tpu.memory_space<vmem>>, vector<8x128xf32>
    %12 = arith.addf %11, %7 : vector<8x128xf32>
    %c0_11 = arith.constant 0 : index
    %c0_12 = arith.constant 0 : index
    %13 = vector.load %arg8[%c0_11, %c0_12] : memref<8x128xf32, #tpu.memory_space<vmem>>, vector<8x128xf32>
    tpu.vector_store %arg8[%c0_11, %c0_12], %12 {strides = array<i32>} : memref<8x128xf32, #tpu.memory_space<vmem>>, vector<8x128xf32>,
    %c128_i32 = arith.constant 128 : i32
    %14 = arith.muli %arg2, %c128_i32 : i32
    %15 = tpu.assume_multiple %14, 128 : i32
    %16 = arith.truncf %6 : vector<8x128xf32> to vector<8x128xbf16>
    %c0_13 = arith.constant 0 : index
    %c0_14 = arith.constant 0 : index
    %17 = arith.index_cast %15 : i32 to index
    %18 = vector.load %arg6[%c0_13, %c0_14, %17] : memref<1x8x256xbf16, #tpu.memory_space<vmem>>, vector<1x8x128xbf16>
    %19 = vector.shape_cast %18 : vector<1x8x128xbf16> to vector<8x128xbf16>
    %20 = vector.shape_cast %16 : vector<8x128xbf16> to vector<1x8x128xbf16>
    tpu.vector_store %arg6[%c0_13, %c0_14, %17], %20 {strides = array<i32>} : memref<1x8x256xbf16, #tpu.memory_space<vmem>>, vector<1x8x128xbf16>,
    %c1_i32 = arith.constant 1 : i32
    %21 = arith.cmpi eq, %arg2, %c1_i32 : i32
    %22 = arith.extui %21 : i1 to i32
    %c0_i32_15 = arith.constant 0 : i32
    %23 = arith.cmpi ne, %22, %c0_i32_15 : i32
    scf.if %23 {
      %c0_16 = arith.constant 0 : index
      %c0_17 = arith.constant 0 : index
      %24 = vector.load %arg7[%c0_16, %c0_17] : memref<8x128xf32, #tpu.memory_space<vmem>>, vector<8x128xf32>
      %cst_18 = arith.constant dense<0.000000e+00> : vector<8xf32>
      %25 = vector.multi_reduction <add>, %24, %cst_18 [1] : vector<8x128xf32> to vector<8xf32>
      %26 = vector.shape_cast %25 : vector<8xf32> to vector<8x1xf32>
      %cst_19 = arith.constant 4.000000e-03 : f32
      %27 = vector.broadcast %cst_19 : f32 to vector<8x1xf32>
      %28 = arith.mulf %26, %27 : vector<8x1xf32>
      %c0_20 = arith.constant 0 : index
      %c0_21 = arith.constant 0 : index
      %29 = vector.load %arg8[%c0_20, %c0_21] : memref<8x128xf32, #tpu.memory_space<vmem>>, vector<8x128xf32>
      %cst_22 = arith.constant dense<0.000000e+00> : vector<8xf32>
      %30 = vector.multi_reduction <add>, %29, %cst_22 [1] : vector<8x128xf32> to vector<8xf32>
      %31 = vector.shape_cast %30 : vector<8xf32> to vector<8x1xf32>
      %cst_23 = arith.constant 4.000000e-03 : f32
      %32 = vector.broadcast %cst_23 : f32 to vector<8x1xf32>
      %33 = arith.mulf %31, %32 : vector<8x1xf32>
      %34 = arith.mulf %28, %28 : vector<8x1xf32>
      %35 = arith.subf %33, %34 : vector<8x1xf32>
      %cst_24 = arith.constant 0.000000e+00 : f32
      %36 = vector.broadcast %cst_24 : f32 to vector<8x1xf32>
      %37 = arith.maximumf %35, %36 : vector<8x1xf32>
      %cst_25 = arith.constant 9.99999974E-6 : f32
      %38 = vector.broadcast %cst_25 : f32 to vector<8x1xf32>
      %39 = arith.addf %37, %38 : vector<8x1xf32>
      %40 = math.rsqrt %39 : vector<8x1xf32>
      %c0_26 = arith.constant 0 : index
      %c0_27 = arith.constant 0 : index
      %c0_28 = arith.constant 0 : index
      %41 = vector.load %arg6[%c0_26, %c0_27, %c0_28] : memref<1x8x256xbf16, #tpu.memory_space<vmem>>, vector<1x8x256xbf16>
      %42 = vector.shape_cast %41 : vector<1x8x256xbf16> to vector<8x256xbf16>
      %43 = arith.extf %42 : vector<8x256xbf16> to vector<8x256xf32>
      %44 = vector.broadcast %28 : vector<8x1xf32> to vector<8x256xf32>
      %45 = arith.subf %43, %44 : vector<8x256xf32>
      %46 = vector.broadcast %40 : vector<8x1xf32> to vector<8x256xf32>
      %47 = arith.mulf %45, %46 : vector<8x256xf32>
      %c0_29 = arith.constant 0 : index
      %c0_30 = arith.constant 0 : index
      %c0_31 = arith.constant 0 : index
      %48 = vector.load %arg5[%c0_29, %c0_30, %c0_31] : memref<1x8x256xbf16, #tpu.memory_space<vmem>>, vector<1x8x256xbf16>
      %49 = vector.shape_cast %48 : vector<1x8x256xbf16> to vector<8x256xbf16>
      %50 = arith.extf %49 : vector<8x256xbf16> to vector<8x256xf32>
      %51 = arith.addf %47, %50 : vector<8x256xf32>
      %cst_32 = arith.constant 0.000000e+00 : f32
      %52 = vector.broadcast %cst_32 : f32 to vector<8x256xf32>
      %53 = arith.maximumf %51, %52 : vector<8x256xf32>
      %54 = tpu.iota {dimensions = array<i32: 1>} : vector<8x256xi32>
      %c250_i32 = arith.constant 250 : i32
      %55 = vector.broadcast %c250_i32 : i32 to vector<8x256xi32>
      %56 = arith.cmpi slt, %54, %55 : vector<8x256xi32>
      %cst_33 = arith.constant 0.000000e+00 : f32
      %57 = vector.broadcast %cst_33 : f32 to vector<8x256xf32>
      %58 = arith.select %56, %53, %57 : vector<8x256xi1>, vector<8x256xf32>
      %59 = arith.truncf %58 : vector<8x256xf32> to vector<8x256xbf16>
      %c0_34 = arith.constant 0 : index
      %c0_35 = arith.constant 0 : index
      %c0_36 = arith.constant 0 : index
      %60 = vector.load %arg6[%c0_34, %c0_35, %c0_36] : memref<1x8x256xbf16, #tpu.memory_space<vmem>>, vector<1x8x256xbf16>
      %61 = vector.shape_cast %60 : vector<1x8x256xbf16> to vector<8x256xbf16>
      %62 = vector.shape_cast %59 : vector<8x256xbf16> to vector<1x8x256xbf16>
      tpu.vector_store %arg6[%c0_34, %c0_35, %c0_36], %62 {strides = array<i32>} : memref<1x8x256xbf16, #tpu.memory_space<vmem>>, vector<1x8x256xbf16>,
    } else {
    }
    return
  }
  func.func @transform_0(%arg0: i32, %arg1: i32, %arg2: i32) -> (i32, i32, i32) {
    %c0_i32 = arith.constant 0 : i32
    %c0_i32_0 = arith.constant 0 : i32
    return %arg0, %c0_i32, %arg2 : i32, i32, i32
  }
  func.func @transform_1(%arg0: i32, %arg1: i32, %arg2: i32) -> (i32, i32) {
    %c0_i32 = arith.constant 0 : i32
    %c0_i32_0 = arith.constant 0 : i32
    return %arg1, %c0_i32 : i32, i32
  }
  func.func @transform_2(%arg0: i32, %arg1: i32, %arg2: i32) -> (i32, i32, i32) {
    %c0_i32 = arith.constant 0 : i32
    %c0_i32_0 = arith.constant 0 : i32
    return %arg0, %arg1, %c0_i32 : i32, i32, i32
  }
  func.func @transform_3(%arg0: i32, %arg1: i32, %arg2: i32) -> (i32, i32, i32) {
    %c0_i32 = arith.constant 0 : i32
    %c0_i32_0 = arith.constant 0 : i32
    return %arg0, %arg1, %c0_i32 : i32, i32, i32
  }
}

</mosaic_0001>

<llo_original>
// kernel: _lambda_.2
$region0: #{_lambda_.2}
  #allocation0 [shape = 'u32[]', space=smem, size = 0x4, offset = 0x4, fixed_abs, tag = 'smem constant byte address 0x4 - core index']
  #allocation1 [shape = 'u32[144,128]{1,0:T(1,128)}', space=vmem, size = 0x12000, scoped, tag = 'internal scratch']
  #allocation2 [shape = 'f32[8,128]{1,0:T(8,128)}', space=vmem, size = 0x1000, scoped, tag = 'scratch operand']
  #allocation3 [shape = 'f32[8,128]{1,0:T(8,128)}', space=vmem, size = 0x1000, scoped, tag = 'scratch operand']
  %s0 = inlined_call_operand.vmem [shape: bf16[2,48,256], index: 0, kind: input, shape index: {}]
  %s1 = inlined_call_operand.vmem [shape: bf16[8,48], index: 1, kind: input, shape index: {}]
  %s2 = inlined_call_operand.vmem [shape: bf16[2,8,256], index: 2, kind: output, shape index: {}]
  %s3 = sld [smem:[#allocation0]]
  $region90: #{_lambda_.2} parent=0
    _
  %s5 = ssub.s32 1, %s3
  %s6 = scalar_select 0, %s5, %s3
  $region1: #{_lambda_.2} parent=0
    #allocation4 [shape = 'u8[24576]{0}', space=vmem, size = 0x6000, scoped, tag = 'input window, operand 0']
    loop: start=0, step=1, limit=6
    $region2: #{_lambda_.2} parent=1 // loop_pre_header
      _
    $region3: #{_lambda_.2} parent=1 // loop_header
      %s8 = sphi 0, %s12
      %p9 = scmp.ge.s32.totalorder %s8, 6
      %s15 = sphi 0, %s34
      %s16 = sphi 0, %s30
      %s17 = sphi 0, %s26
      %s18 = sphi 0, %s15
      %s19 = sphi 0, %s16
      %s20 = sphi 0, %s17
      %s21 = sphi 0, %s18
      %s22 = sphi 0, %s19
      %s23 = sphi 0, %s20
      %s39 = sphi 0, %s41
      %s42 = sphi 0, %s39
      %s43 = sphi 0, %s42
      %s59 = sphi 0, %s43
      %s65 = sphi 0, %s67
      %s68 = sphi 0, %s65
      %s69 = sphi 0, %s68
      %s85 = sphi 0, %s69
      %s93 = sphi 0, %s95
      %s96 = sphi 0, %s93
      %s97 = sphi 0, %s96
      %s113 = sphi 0, %s97
    $region4: #{_lambda_.2} parent=1 // loop_header_branch
      %11 = sbr.rel (%p9) target = $region8
    $region5: #{_lambda_.2} parent=1 // loop_body
      %s13 = ssub.s32 %s8, 1
      %s14 = ssub.s32 %s8, 2
      %s24 = sadd.s32 1, %s17
      %p25 = scmp.ge.s32.totalorder %s24, 2
      %s26 = scalar_select %p25, 0, %s24
      %s27 = sadd.s32 1, %s16
      %s28 = scalar_select %p25, %s27, %s16
      %p29 = scmp.ge.s32.totalorder %s28, 1
      %s30 = scalar_select %p29, 0, %s28
      %s31 = sadd.s32 1, %s15
      %s32 = scalar_select %p29, %s31, %s15
      %p33 = scmp.ge.s32.totalorder %s32, 2
      %s34 = scalar_select %p33, 0, %s32
      %s35 = ssub.s32 %s15, %s34
      %s36 = ssub.s32 %s17, %s26
      %s37 = sor.u32 %s35, %s36
      %p38 = scmp.eq.s32.totalorder %s37, 0
      %s40 = sadd.s32 %s39, 1
      %s41 = scalar_select %p38, %s39, %s40
      %p44 = pneg %p38
      %p45 = scmp.eq.s32.totalorder %s8, 3
      %p46 = por %p44, %p45
      %p47 = scmp.ne.s32.totalorder %s39, %s42
      %p48 = scmp.eq.s32.totalorder %s8, 0
      %p49 = por %p47, %p48
      %p50 = scmp.ne.s32.totalorder %s39, %s42
      %p51 = scmp.eq.s32.totalorder %s13, 3
      %p52 = por %p50, %p51
      %p53 = scmp.ne.s32.totalorder %s42, %s43
      %p54 = scmp.eq.s32.totalorder %s13, 0
      %p55 = por %p53, %p54
      %p56 = scmp.ne.s32.totalorder %s42, %s43
      %p57 = scmp.eq.s32.totalorder %s14, 3
      %p58 = por %p56, %p57
      %p60 = scmp.ne.s32.totalorder %s43, %s59
      %p61 = scmp.eq.s32.totalorder %s14, 0
      %p62 = por %p60, %p61
      %s63 = ssub.s32 %s16, %s30
      %p64 = scmp.eq.s32.totalorder %s63, 0
      %s66 = sadd.s32 %s65, 1
      %s67 = scalar_select %p64, %s65, %s66
      %p70 = pneg %p64
      %p71 = scmp.eq.s32.totalorder %s8, 3
      %p72 = por %p70, %p71
      %p73 = scmp.ne.s32.totalorder %s65, %s68
      %p74 = scmp.eq.s32.totalorder %s8, 0
      %p75 = por %p73, %p74
      %p76 = scmp.ne.s32.totalorder %s65, %s68
      %p77 = scmp.eq.s32.totalorder %s13, 3
      %p78 = por %p76, %p77
      %p79 = scmp.ne.s32.totalorder %s68, %s69
      %p80 = scmp.eq.s32.totalorder %s13, 0
      %p81 = por %p79, %p80
      %p82 = scmp.ne.s32.totalorder %s68, %s69
      %p83 = scmp.eq.s32.totalorder %s14, 3
      %p84 = por %p82, %p83
      %p86 = scmp.ne.s32.totalorder %s69, %s85
      %p87 = scmp.eq.s32.totalorder %s14, 0
      %p88 = por %p86, %p87
      %s89 = ssub.s32 %s15, %s34
      %s90 = ssub.s32 %s16, %s30
      %s91 = sor.u32 %s89, %s90
      %p92 = scmp.eq.s32.totalorder %s91, 0
      %s94 = sadd.s32 %s93, 1
      %s95 = scalar_select %p92, %s93, %s94
      %p98 = pneg %p92
      %p99 = scmp.eq.s32.totalorder %s8, 3
      %p100 = por %p98, %p99
      %p101 = scmp.ne.s32.totalorder %s93, %s96
      %p102 = scmp.eq.s32.totalorder %s8, 0
      %p103 = por %p101, %p102
      %p104 = scmp.ne.s32.totalorder %s93, %s96
      %p105 = scmp.eq.s32.totalorder %s13, 3
      %p106 = por %p104, %p105
      %p107 = scmp.ne.s32.totalorder %s96, %s97
      %p108 = scmp.eq.s32.totalorder %s13, 0
      %p109 = por %p107, %p108
      %p110 = scmp.ne.s32.totalorder %s96, %s97
      %p111 = scmp.eq.s32.totalorder %s14, 3
      %p112 = por %p110, %p111
      %p114 = scmp.ne.s32.totalorder %s97, %s113
      %p115 = scmp.eq.s32.totalorder %s14, 0
      %p116 = por %p114, %p115
      %p117 = scmp.le.s32.totalorder 1, %s8
      %p118 = scmp.lt.s32.totalorder %s8, 5
      %p119 = pnand %p117, %p118
      %p120 = pneg %p119
      // Predicated region
      $region9: #{_lambda_.2} parent=5 // pred_check
        _
      $region10: #{_lambda_.2} parent=5 // pred_check_branch
        %122 = sbr.rel (%p119) target = $region12
      $region11: #{_lambda_.2} parent=5 // pred_region
        %s123 = ssub.s32 %s8, 1
        // Predicated region
        $region13: #{_lambda_.2} parent=11 // pred_check
          %p124 = pneg %p81
        $region14: #{_lambda_.2} parent=11 // pred_check_branch
          %126 = sbr.rel (%p124) target = $region16
        $region15: #{_lambda_.2} parent=11 // pred_region
          %p127 = scmp.lt.s32.totalorder %s19, 0
          %s128 = scalar_select %p127, %s19, 0
          %s129 = smul.addr %s128, 4
          %s130 = scalar_lea.vmem %s1, %s129
        $region16: #{_lambda_.2} parent=11 // pred_fallthru
          _
      $region12: #{_lambda_.2} parent=5 // pred_fallthru
        _
      %p131 = scmp.lt.s32.totalorder %s8, 4
      // Predicated region
      $region17: #{_lambda_.2} parent=5 // pred_check
        %p132 = pneg %p131
      $region18: #{_lambda_.2} parent=5 // pred_check_branch
        %134 = sbr.rel (%p132) target = $region20
      $region19: #{_lambda_.2} parent=5 // pred_region
        // Predicated region
        $region21: #{_lambda_.2} parent=19 // pred_check
          %p135 = pneg %p49
        $region22: #{_lambda_.2} parent=19 // pred_check_branch
          %137 = sbr.rel (%p135) target = $region24
        $region23: #{_lambda_.2} parent=19 // pred_region
          %s138 = sand.u32 %s39, 1
          %s139 = sand.u32 %s39, 1
          %s140 = smul.addr %s139, 24
          %s141 = scalar_lea.vmem [#allocation4], %s140
          %s142 = smul.addr %s15, 12
          %s143 = sadd.s32 %s17, %s142
          %s144 = smul.addr %s143, 4
          %s145 = scalar_lea.vmem %s0, %s144
          // Predicated region
          $region25: #{_lambda_.2} parent=23 // pred_check
            _
          $region26: #{_lambda_.2} parent=23 // pred_check_branch
            %147 = sbr.rel (0) target = $region28
          $region27: #{_lambda_.2} parent=23 // pred_region
            // Predicated region
            $region29: #{_lambda_.2} parent=27 // pred_check
              _
            $region30: #{_lambda_.2} parent=27 // pred_check_branch
              %149 = sbr.rel target = $region32
            $region31: #{_lambda_.2} parent=27 // pred_region
              // Predicated region
              $region44: #{_lambda_.2} parent=31 // pred_check
                _
              $region45: #{_lambda_.2} parent=31 // pred_check_branch
                %174 = sbr.rel (0) target = $region47
              $region46: #{_lambda_.2} parent=31 // pred_region
                loop: start=0, step=1, limit=1
                $region48: #{_lambda_.2} parent=46 // loop_pre_header
                  _
                $region49: #{_lambda_.2} parent=46 // loop_header
                  %s176 = sphi 0, %s180
                  %p177 = scmp.ge.s32.totalorder %s176, 1
                  %s181 = sphi %s145, %s145
                  %s182 = sphi %s141, %s141
                $region50: #{_lambda_.2} parent=46 // loop_header_branch
                  %179 = sbr.rel (%p177) target = $region54
                $region51: #{_lambda_.2} parent=46 // loop_body
                  _
                $region52: #{_lambda_.2} parent=46 // loop_footer
                  %s180 = sadd.s32 1, %s176
                $region53: #{_lambda_.2} parent=46 // loop_footer_branch
                  %175 = sbr.rel target = $region49
                $region54: #{_lambda_.2} parent=46 // loop_exit
                  _
                loop: start=0, step=1, limit=1
                $region55: #{_lambda_.2} parent=46 // loop_pre_header
                  _
                $region56: #{_lambda_.2} parent=46 // loop_header
                  %s185 = sphi 0, %s189
                  %p186 = scmp.ge.s32.totalorder %s185, 1
                  %s190 = sphi %s145, %s145
                  %s191 = sphi %s141, %s141
                $region57: #{_lambda_.2} parent=46 // loop_header_branch
                  %188 = sbr.rel (%p186) target = $region61
                $region58: #{_lambda_.2} parent=46 // loop_body
                  %v192 = vld [vmem:[%s190] sm:$0xf]
                  %193 = vst [vmem:[%s191] sm:$0xf] %v192
                  %v194 = vld [vmem:[%s190 + $0x8] sm:$0xf]
                  %195 = vst [vmem:[%s191 + $0x4] sm:$0xf] %v194
                  %v196 = vld [vmem:[%s190 + $0x10] sm:$0xf]
                  %197 = vst [vmem:[%s191 + $0x8] sm:$0xf] %v196
                  %v198 = vld [vmem:[%s190 + $0x18] sm:$0xf]
                  %199 = vst [vmem:[%s191 + $0xc] sm:$0xf] %v198
                  %v200 = vld [vmem:[%s190 + $0x20] sm:$0xf]
                  %201 = vst [vmem:[%s191 + $0x10] sm:$0xf] %v200
                  %v202 = vld [vmem:[%s190 + $0x28] sm:$0xf]
                  %203 = vst [vmem:[%s191 + $0x14] sm:$0xf] %v202
                $region59: #{_lambda_.2} parent=46 // loop_footer
                  %s189 = sadd.s32 1, %s185
                $region60: #{_lambda_.2} parent=46 // loop_footer_branch
                  %184 = sbr.rel target = $region56
                $region61: #{_lambda_.2} parent=46 // loop_exit
                  _
              $region47: #{_lambda_.2} parent=31 // pred_fallthru
                _
            $region32: #{_lambda_.2} parent=27 // pred_fallthru
              _
            // Predicated region
            $region33: #{_lambda_.2} parent=27 // pred_check
              _
            $region34: #{_lambda_.2} parent=27 // pred_check_branch
              %151 = sbr.rel (0) target = $region36
            $region35: #{_lambda_.2} parent=27 // pred_region
              loop: start=0, step=1, limit=1
              $region37: #{_lambda_.2} parent=35 // loop_pre_header
                _
              $region38: #{_lambda_.2} parent=35 // loop_header
                %s154 = sphi 0, %s158
                %p155 = scmp.ge.s32.totalorder %s154, 1
                %s159 = sphi %s145, %s145
                %s160 = sphi %s141, %s141
              $region39: #{_lambda_.2} parent=35 // loop_header_branch
                %157 = sbr.rel (%p155) target = $region43
              $region40: #{_lambda_.2} parent=35 // loop_body
                %v161 = vld [vmem:[%s159] sm:$0xf]
                %162 = vst [vmem:[%s160] sm:$0xf] %v161
                %v163 = vld [vmem:[%s159 + $0x8] sm:$0xf]
                %164 = vst [vmem:[%s160 + $0x4] sm:$0xf] %v163
                %v165 = vld [vmem:[%s159 + $0x10] sm:$0xf]
                %166 = vst [vmem:[%s160 + $0x8] sm:$0xf] %v165
                %v167 = vld [vmem:[%s159 + $0x18] sm:$0xf]
                %168 = vst [vmem:[%s160 + $0xc] sm:$0xf] %v167
                %v169 = vld [vmem:[%s159 + $0x20] sm:$0xf]
                %170 = vst [vmem:[%s160 + $0x10] sm:$0xf] %v169
                %v171 = vld [vmem:[%s159 + $0x28] sm:$0xf]
                %172 = vst [vmem:[%s160 + $0x14] sm:$0xf] %v171
              $region41: #{_lambda_.2} parent=35 // loop_footer
                %s158 = sadd.s32 1, %s154
              $region42: #{_lambda_.2} parent=35 // loop_footer_branch
                %153 = sbr.rel target = $region38
              $region43: #{_lambda_.2} parent=35 // loop_exit
                _
            $region36: #{_lambda_.2} parent=27 // pred_fallthru
              _
          $region28: #{_lambda_.2} parent=23 // pred_fallthru
            _
          %204 = vnop
        $region24: #{_lambda_.2} parent=19 // pred_fallthru
          _
      $region20: #{_lambda_.2} parent=5 // pred_fallthru
        _
      %p205 = scmp.le.s32.totalorder 1, %s8
      %p206 = scmp.lt.s32.totalorder %s8, 5
      %p207 = pnand %p205, %p206
      %p208 = pneg %p207
      // Predicated region
      $region62: #{_lambda_.2} parent=5 // pred_check
        _
      $region63: #{_lambda_.2} parent=5 // pred_check_branch
        %210 = sbr.rel (%p207) target = $region65
      $region64: #{_lambda_.2} parent=5 // pred_region
        %s211 = ssub.s32 %s8, 1
        %s212 = sand.u32 %s42, 1
        %s213 = sand.u32 %s42, 1
        %s214 = smul.addr %s213, 24
        %s215 = scalar_lea.vmem [#allocation4], %s214
        // Predicated region
        $region66: #{_lambda_.2} parent=64 // pred_check
          %p216 = pneg %p55
        $region67: #{_lambda_.2} parent=64 // pred_check_branch
          %218 = sbr.rel (%p216) target = $region69
        $region68: #{_lambda_.2} parent=64 // pred_region
          _
        $region69: #{_lambda_.2} parent=64 // pred_fallthru
          _
        %s219 = sand.u32 %s42, 1
        %s220 = sand.u32 %s42, 1
        %s221 = smul.addr %s220, 24
        %s222 = scalar_lea.vmem [#allocation4], %s221
        %p223 = pneg %p55
        %p224 = pneg %p52
        %p225 = scmp.lt.s32.totalorder %s19, 0
        %s226 = scalar_select %p225, %s19, 0
        %s227 = smul.addr %s226, 4
        %s228 = scalar_lea.vmem %s1, %s227
        %p229 = pneg %p81
        %p230 = pneg %p78
        %p231 = pneg %p109
        %p232 = pneg %p106
        %p233 = scmp.lt.s32.totalorder %s18, 1
        %s234 = scalar_select %p233, %s18, 1
        %p235 = scmp.lt.s32.totalorder %s19, 0
        %s236 = scalar_select %p235, %s19, 0
        %s237 = smul.addr %s236, 2
        %s238 = smul.addr %s234, 2
        %s239 = sadd.s32 %s237, %s238
        %s240 = smul.addr %s239, 4
        %s241 = scalar_lea.vmem %s2, %s240
        %p242 = scmp.lt.s32.totalorder %s19, 0
        %s243 = scalar_select %p242, %s19, 0
        %s244 = smul.addr %s243, 4
        %s245 = scalar_lea.vmem %s1, %s244
        %p246 = scmp.lt.s32.totalorder %s18, 1
        %s247 = scalar_select %p246, %s18, 1
        %p248 = scmp.lt.s32.totalorder %s19, 0
        %s249 = scalar_select %p248, %s19, 0
        %s250 = smul.addr %s249, 2
        %s251 = smul.addr %s247, 2
        %s252 = sadd.s32 %s250, %s251
        %s253 = smul.addr %s252, 4
        %s254 = scalar_lea.vmem %s2, %s253
        %p256 = scmp.eq.s32.totalorder %s20, 0
        // Predicated region
        $region70: #{_lambda_.2} parent=64 // pred_check
          %p257 = pneg %p256
        $region71: #{_lambda_.2} parent=64 // pred_check_branch
          %259 = sbr.rel (%p257) target = $region73
        $region72: #{_lambda_.2} parent=64 // pred_region
          %260 = vst [vmem:[#allocation2] sm:$0xff] 0.0
          %261 = vst [vmem:[#allocation3] sm:$0xff] 0.0
        $region73: #{_lambda_.2} parent=64 // pred_fallthru
          _
        %v262 = vld [vmem:[%s245] sm:$0xf]
        %v263 = vld [vmem:[%s215] sm:$0xf]
        %v264 = vld [vmem:[%s215 + $0x4] sm:$0xf]
        %v265 = vld [vmem:[%s215 + $0x8] sm:$0xf]
        %v266 = vld [vmem:[%s215 + $0xc] sm:$0xf]
        %v267 = vld [vmem:[%s215 + $0x10] sm:$0xf]
        %v268 = vld [vmem:[%s215 + $0x14] sm:$0xf]
        %v275 = vunpack.c.l.b16 %v263
        %v276 = vunpack.c.l.b16 %v264
        %v277 = vunpack.c.l.b16 %v265
        %v278 = vunpack.c.l.b16 %v266
        %v279 = vunpack.c.l.b16 %v267
        %v280 = vunpack.c.l.b16 %v268
        %v281 = vpack.c.b16 %v276, %v275
        %v282 = vpack.c.b16 %v278, %v277
        %v283 = vpack.c.b16 %v280, %v279
        %vm287 = vcmask 392192
        %v289 = vsel %vm287, %v262, 0
        %291 = vmatprep.subr.bf16.mxu0 0
        %292 = vmatpush1.bf16.msra.mxu0 %v281
        %293 = vmatprep.subr.bf16.mxu0 0
        %294 = vmatpush1.bf16.msra.mxu0 %v282
        %295 = vmatprep.subr.bf16.mxu0 0
        %296 = vmatpush1.bf16.msra.mxu0 %v283
        %297 = vmatprep.subr.bf16.mxu0 0
        %298 = vmatpush1.bf16.msra.mxu0 0
        %299 = vmatprep.subr.bf16.mxu0 0
        %300 = vmatpush1.bf16.msra.mxu0 0
        %301 = vmatprep.subr.bf16.mxu0 0
        %302 = vmatpush1.bf16.msra.mxu0 0
        %303 = vmatprep.subr.bf16.mxu0 0
        %304 = vmatpush1.bf16.msra.mxu0 0
        %305 = vmatprep.subr.bf16.mxu0 0
        %306 = vmatpush1.bf16.msra.mxu0 0
        %307 = vmatprep.subr.bf16.mxu0 0
        %308 = vmatpush1.bf16.msra.mxu0 0
        %309 = vmatprep.subr.bf16.mxu0 0
        %310 = vmatpush1.bf16.msra.mxu0 0
        %311 = vmatprep.subr.bf16.mxu0 0
        %312 = vmatpush1.bf16.msra.mxu0 0
        %313 = vmatprep.subr.bf16.mxu0 0
        %314 = vmatpush1.bf16.msra.mxu0 0
        %315 = vmatprep.subr.bf16.mxu0 0
        %316 = vmatpush1.bf16.msra.mxu0 0
        %317 = vmatprep.subr.bf16.mxu0 0
        %318 = vmatpush1.bf16.msra.mxu0 0
        %319 = vmatprep.subr.bf16.mxu0 0
        %320 = vmatpush1.bf16.msra.mxu0 0
        %321 = vmatprep.subr.bf16.mxu0 0
        %322 = vmatpush1.bf16.msra.mxu0 0
        %323 = vmatprep.mubr.bf16.mxu0 0
        %324 = vmatmul.mubr.bf16.gmra.mrb[0].mxu0 %v289
        %v325 = vpop.f32.mrb[0].mxu0
        %v326 = vadd.f32 0.0, %v325
        %v327 = vpop.f32.mrb[0].mxu0
        %v328 = vpop.f32.mrb[0].mxu0
        %v329 = vpop.f32.mrb[0].mxu0
        %330 = vdwg.mxu0
        %v331 = vmul.f32 %v326, %v326
        %v332 = vld [vmem:[#allocation2] sm:$0xff]
        %v333 = vadd.f32 %v332, %v326
        %334 = vst [vmem:[#allocation2] sm:$0xff] %v333
        %v335 = vld [vmem:[#allocation3] sm:$0xff]
        %v336 = vadd.f32 %v335, %v331
        %337 = vst [vmem:[#allocation3] sm:$0xff] %v336
        %s338 = smul.u32 %s20, 128
        %v339 = vpack.c.bf16 %v326, %v326
        %s340 = sshra.s32 %s338, 7
        %s341 = sand.u32 %s338, 127
        %s342 = smul.addr %s340, 4
        %s343 = scalar_lea.vmem %s254, %s342
        %344 = vst [vmem:[%s343] sm:$0xf] %v339
        %p345 = scmp.eq.s32.totalorder %s20, 1
        // Predicated region
        $region74: #{_lambda_.2} parent=64 // pred_check
          %p346 = pneg %p345
        $region75: #{_lambda_.2} parent=64 // pred_check_branch
          %348 = sbr.rel (%p346) target = $region77
        $region76: #{_lambda_.2} parent=64 // pred_region
          %v349 = vld [vmem:[#allocation2] sm:$0xff]
          %350 = vadd.xlane.f32.xlu0 %v349
          %v351 = vpop.xlane.xlu0 %350
          %v352 = vmul.f32 %v351, 0.004
          %v353 = vld [vmem:[#allocation3] sm:$0xff]
          %354 = vadd.xlane.f32.xlu0 %v353
          %v355 = vpop.xlane.xlu0 %354
          %v356 = vmul.f32 %v355, 0.004
          %v357 = vmul.f32 %v352, %v352
          %v358 = vsub.f32 %v356, %v357
          %v359 = vmax.f32 %v358, 0.0
          %v360 = vadd.f32 %v359, 1e-05
          %v361 = vrsqrt.pop %v360
          %v362 = vld [vmem:[%s254] sm:$0xff]
          %v363 = vunpack.c.l.bf16 %v362
          %v364 = vunpack.c.h.bf16 %v362
          %v365 = vsub.f32 %v363, %v352
          %v366 = vsub.f32 %v364, %v352
          %v367 = vmul.f32 %v365, %v361
          %v368 = vmul.f32 %v366, %v361
          %v369 = vmax.f32 %v367, 0.0
          %v370 = vmax.f32 %v368, 0.0
          %v371 = vlaneseq
          %v372 = vand.u32 %v371, 127
          %v373 = vadd.s32 %v372, 128
          %vm374 = vcmp.lt.s32.totalorder %v372, 250
          %vm375 = vcmp.lt.s32.totalorder %v373, 250
          %v376 = vsel %vm374, %v369, 0.0
          %v377 = vsel %vm375, %v370, 0.0
          %v378 = vpack.c.bf16 %v376, %v376
          %v379 = vpack.c.bf16 %v377, %v377
          %v382 = vunpack.c.l.b16 %v378
          %v383 = vunpack.c.l.b16 %v379
          %v384 = vpack.c.b16 %v383, %v382
          %386 = vst [vmem:[%s254] sm:$0xff] %v384
        $region77: #{_lambda_.2} parent=64 // pred_fallthru
          _
        %p387 = scmp.lt.s32.totalorder %s18, 1
        %s388 = scalar_select %p387, %s18, 1
        %p389 = scmp.lt.s32.totalorder %s19, 0
        %s390 = scalar_select %p389, %s19, 0
        %s391 = smul.addr %s390, 2
        %s392 = smul.addr %s388, 2
        %s393 = sadd.s32 %s391, %s392
        %s394 = smul.addr %s393, 4
        %s395 = scalar_lea.vmem %s2, %s394
        // Predicated region
        $region78: #{_lambda_.2} parent=64 // pred_check
          %p396 = pneg %p106
        $region79: #{_lambda_.2} parent=64 // pred_check_branch
          %398 = sbr.rel (%p396) target = $region81
        $region80: #{_lambda_.2} parent=64 // pred_region
          _
        $region81: #{_lambda_.2} parent=64 // pred_fallthru
          _
      $region65: #{_lambda_.2} parent=5 // pred_fallthru
        _
      %p399 = scmp.le.s32.totalorder 2, %s8
      // Predicated region
      $region82: #{_lambda_.2} parent=5 // pred_check
        %p400 = pneg %p399
      $region83: #{_lambda_.2} parent=5 // pred_check_branch
        %402 = sbr.rel (%p400) target = $region85
      $region84: #{_lambda_.2} parent=5 // pred_region
        %s403 = ssub.s32 %s8, 2
        // Predicated region
        $region86: #{_lambda_.2} parent=84 // pred_check
          %p404 = pneg %p112
        $region87: #{_lambda_.2} parent=84 // pred_check_branch
          %406 = sbr.rel (%p404) target = $region89
        $region88: #{_lambda_.2} parent=84 // pred_region
          %p407 = scmp.lt.s32.totalorder %s21, 1
          %s408 = scalar_select %p407, %s21, 1
          %p409 = scmp.lt.s32.totalorder %s22, 0
          %s410 = scalar_select %p409, %s22, 0
          %s411 = smul.addr %s410, 2
          %s412 = smul.addr %s408, 2
          %s413 = sadd.s32 %s411, %s412
          %s414 = smul.addr %s413, 4
          %s415 = scalar_lea.vmem %s2, %s414
        $region89: #{_lambda_.2} parent=84 // pred_fallthru
          _
      $region85: #{_lambda_.2} parent=5 // pred_fallthru
        _
    $region6: #{_lambda_.2} parent=1 // loop_footer
      %s12 = sadd.s32 1, %s8
    $region7: #{_lambda_.2} parent=1 // loop_footer_branch
      %7 = sbr.rel target = $region3
    $region8: #{_lambda_.2} parent=1 // loop_exit
      _

// kernel: _lambda_.3
$region0: #{_lambda_.3}
  #allocation0 [shape = 'u32[]', space=smem, size = 0x4, offset = 0x4, fixed_abs, tag = 'smem constant byte address 0x4 - core index']
  #allocation1 [shape = 'u32[144,128]{1,0:T(1,128)}', space=vmem, size = 0x12000, scoped, tag = 'internal scratch']
  #allocation2 [shape = 'f32[8,128]{1,0:T(8,128)}', space=vmem, size = 0x1000, scoped, tag = 'scratch operand']
  #allocation3 [shape = 'f32[8,128]{1,0:T(8,128)}', space=vmem, size = 0x1000, scoped, tag = 'scratch operand']
  %s0 = inlined_call_operand.vmem [shape: bf16[2,48,256], index: 0, kind: input, shape index: {}]
  %s1 = inlined_call_operand.vmem [shape: bf16[8,48], index: 1, kind: input, shape index: {}]
  %s2 = inlined_call_operand.vmem [shape: bf16[2,8,256], index: 2, kind: input, shape index: {}]
  %s3 = inlined_call_operand.vmem [shape: bf16[2,8,256], index: 3, kind: output, shape index: {}]
  %s4 = sld [smem:[#allocation0]]
  $region94: #{_lambda_.3} parent=0
    _
  %s6 = ssub.s32 1, %s4
  %s7 = scalar_select 0, %s6, %s4
  $region1: #{_lambda_.3} parent=0
    #allocation4 [shape = 'u8[24576]{0}', space=vmem, size = 0x6000, scoped, tag = 'input window, operand 0']
    loop: start=0, step=1, limit=6
    $region2: #{_lambda_.3} parent=1 // loop_pre_header
      _
    $region3: #{_lambda_.3} parent=1 // loop_header
      %s9 = sphi 0, %s13
      %p10 = scmp.ge.s32.totalorder %s9, 6
      %s16 = sphi 0, %s35
      %s17 = sphi 0, %s31
      %s18 = sphi 0, %s27
      %s19 = sphi 0, %s16
      %s20 = sphi 0, %s17
      %s21 = sphi 0, %s18
      %s22 = sphi 0, %s19
      %s23 = sphi 0, %s20
      %s24 = sphi 0, %s21
      %s40 = sphi 0, %s42
      %s43 = sphi 0, %s40
      %s44 = sphi 0, %s43
      %s60 = sphi 0, %s44
      %s66 = sphi 0, %s68
      %s69 = sphi 0, %s66
      %s70 = sphi 0, %s69
      %s86 = sphi 0, %s70
      %s94 = sphi 0, %s96
      %s97 = sphi 0, %s94
      %s98 = sphi 0, %s97
      %s114 = sphi 0, %s98
      %s122 = sphi 0, %s124
      %s125 = sphi 0, %s122
      %s126 = sphi 0, %s125
      %s142 = sphi 0, %s126
    $region4: #{_lambda_.3} parent=1 // loop_header_branch
      %12 = sbr.rel (%p10) target = $region8
    $region5: #{_lambda_.3} parent=1 // loop_body
      %s14 = ssub.s32 %s9, 1
      %s15 = ssub.s32 %s9, 2
      %s25 = sadd.s32 1, %s18
      %p26 = scmp.ge.s32.totalorder %s25, 2
      %s27 = scalar_select %p26, 0, %s25
      %s28 = sadd.s32 1, %s17
      %s29 = scalar_select %p26, %s28, %s17
      %p30 = scmp.ge.s32.totalorder %s29, 1
      %s31 = scalar_select %p30, 0, %s29
      %s32 = sadd.s32 1, %s16
      %s33 = scalar_select %p30, %s32, %s16
      %p34 = scmp.ge.s32.totalorder %s33, 2
      %s35 = scalar_select %p34, 0, %s33
      %s36 = ssub.s32 %s16, %s35
      %s37 = ssub.s32 %s18, %s27
      %s38 = sor.u32 %s36, %s37
      %p39 = scmp.eq.s32.totalorder %s38, 0
      %s41 = sadd.s32 %s40, 1
      %s42 = scalar_select %p39, %s40, %s41
      %p45 = pneg %p39
      %p46 = scmp.eq.s32.totalorder %s9, 3
      %p47 = por %p45, %p46
      %p48 = scmp.ne.s32.totalorder %s40, %s43
      %p49 = scmp.eq.s32.totalorder %s9, 0
      %p50 = por %p48, %p49
      %p51 = scmp.ne.s32.totalorder %s40, %s43
      %p52 = scmp.eq.s32.totalorder %s14, 3
      %p53 = por %p51, %p52
      %p54 = scmp.ne.s32.totalorder %s43, %s44
      %p55 = scmp.eq.s32.totalorder %s14, 0
      %p56 = por %p54, %p55
      %p57 = scmp.ne.s32.totalorder %s43, %s44
      %p58 = scmp.eq.s32.totalorder %s15, 3
      %p59 = por %p57, %p58
      %p61 = scmp.ne.s32.totalorder %s44, %s60
      %p62 = scmp.eq.s32.totalorder %s15, 0
      %p63 = por %p61, %p62
      %s64 = ssub.s32 %s17, %s31
      %p65 = scmp.eq.s32.totalorder %s64, 0
      %s67 = sadd.s32 %s66, 1
      %s68 = scalar_select %p65, %s66, %s67
      %p71 = pneg %p65
      %p72 = scmp.eq.s32.totalorder %s9, 3
      %p73 = por %p71, %p72
      %p74 = scmp.ne.s32.totalorder %s66, %s69
      %p75 = scmp.eq.s32.totalorder %s9, 0
      %p76 = por %p74, %p75
      %p77 = scmp.ne.s32.totalorder %s66, %s69
      %p78 = scmp.eq.s32.totalorder %s14, 3
      %p79 = por %p77, %p78
      %p80 = scmp.ne.s32.totalorder %s69, %s70
      %p81 = scmp.eq.s32.totalorder %s14, 0
      %p82 = por %p80, %p81
      %p83 = scmp.ne.s32.totalorder %s69, %s70
      %p84 = scmp.eq.s32.totalorder %s15, 3
      %p85 = por %p83, %p84
      %p87 = scmp.ne.s32.totalorder %s70, %s86
      %p88 = scmp.eq.s32.totalorder %s15, 0
      %p89 = por %p87, %p88
      %s90 = ssub.s32 %s16, %s35
      %s91 = ssub.s32 %s17, %s31
      %s92 = sor.u32 %s90, %s91
      %p93 = scmp.eq.s32.totalorder %s92, 0
      %s95 = sadd.s32 %s94, 1
      %s96 = scalar_select %p93, %s94, %s95
      %p99 = pneg %p93
      %p100 = scmp.eq.s32.totalorder %s9, 3
      %p101 = por %p99, %p100
      %p102 = scmp.ne.s32.totalorder %s94, %s97
      %p103 = scmp.eq.s32.totalorder %s9, 0
      %p104 = por %p102, %p103
      %p105 = scmp.ne.s32.totalorder %s94, %s97
      %p106 = scmp.eq.s32.totalorder %s14, 3
      %p107 = por %p105, %p106
      %p108 = scmp.ne.s32.totalorder %s97, %s98
      %p109 = scmp.eq.s32.totalorder %s14, 0
      %p110 = por %p108, %p109
      %p111 = scmp.ne.s32.totalorder %s97, %s98
      %p112 = scmp.eq.s32.totalorder %s15, 3
      %p113 = por %p111, %p112
      %p115 = scmp.ne.s32.totalorder %s98, %s114
      %p116 = scmp.eq.s32.totalorder %s15, 0
      %p117 = por %p115, %p116
      %s118 = ssub.s32 %s16, %s35
      %s119 = ssub.s32 %s17, %s31
      %s120 = sor.u32 %s118, %s119
      %p121 = scmp.eq.s32.totalorder %s120, 0
      %s123 = sadd.s32 %s122, 1
      %s124 = scalar_select %p121, %s122, %s123
      %p127 = pneg %p121
      %p128 = scmp.eq.s32.totalorder %s9, 3
      %p129 = por %p127, %p128
      %p130 = scmp.ne.s32.totalorder %s122, %s125
      %p131 = scmp.eq.s32.totalorder %s9, 0
      %p132 = por %p130, %p131
      %p133 = scmp.ne.s32.totalorder %s122, %s125
      %p134 = scmp.eq.s32.totalorder %s14, 3
      %p135 = por %p133, %p134
      %p136 = scmp.ne.s32.totalorder %s125, %s126
      %p137 = scmp.eq.s32.totalorder %s14, 0
      %p138 = por %p136, %p137
      %p139 = scmp.ne.s32.totalorder %s125, %s126
      %p140 = scmp.eq.s32.totalorder %s15, 3
      %p141 = por %p139, %p140
      %p143 = scmp.ne.s32.totalorder %s126, %s142
      %p144 = scmp.eq.s32.totalorder %s15, 0
      %p145 = por %p143, %p144
      %p146 = scmp.le.s32.totalorder 1, %s9
      %p147 = scmp.lt.s32.totalorder %s9, 5
      %p148 = pnand %p146, %p147
      %p149 = pneg %p148
      // Predicated region
      $region9: #{_lambda_.3} parent=5 // pred_check
        _
      $region10: #{_lambda_.3} parent=5 // pred_check_branch
        %151 = sbr.rel (%p148) target = $region12
      $region11: #{_lambda_.3} parent=5 // pred_region
        %s152 = ssub.s32 %s9, 1
        // Predicated region
        $region13: #{_lambda_.3} parent=11 // pred_check
          %p153 = pneg %p82
        $region14: #{_lambda_.3} parent=11 // pred_check_branch
          %155 = sbr.rel (%p153) target = $region16
        $region15: #{_lambda_.3} parent=11 // pred_region
          %p156 = scmp.lt.s32.totalorder %s20, 0
          %s157 = scalar_select %p156, %s20, 0
          %s158 = smul.addr %s157, 4
          %s159 = scalar_lea.vmem %s1, %s158
        $region16: #{_lambda_.3} parent=11 // pred_fallthru
          _
      $region12: #{_lambda_.3} parent=5 // pred_fallthru
        _
      %p160 = scmp.lt.s32.totalorder %s9, 4
      // Predicated region
      $region17: #{_lambda_.3} parent=5 // pred_check
        %p161 = pneg %p160
      $region18: #{_lambda_.3} parent=5 // pred_check_branch
        %163 = sbr.rel (%p161) target = $region20
      $region19: #{_lambda_.3} parent=5 // pred_region
        // Predicated region
        $region21: #{_lambda_.3} parent=19 // pred_check
          %p164 = pneg %p50
        $region22: #{_lambda_.3} parent=19 // pred_check_branch
          %166 = sbr.rel (%p164) target = $region24
        $region23: #{_lambda_.3} parent=19 // pred_region
          %s167 = sand.u32 %s40, 1
          %s168 = sand.u32 %s40, 1
          %s169 = smul.addr %s168, 24
          %s170 = scalar_lea.vmem [#allocation4], %s169
          %s171 = smul.addr %s16, 12
          %s172 = sadd.s32 %s18, %s171
          %s173 = smul.addr %s172, 4
          %s174 = scalar_lea.vmem %s0, %s173
          // Predicated region
          $region25: #{_lambda_.3} parent=23 // pred_check
            _
          $region26: #{_lambda_.3} parent=23 // pred_check_branch
            %176 = sbr.rel (0) target = $region28
          $region27: #{_lambda_.3} parent=23 // pred_region
            // Predicated region
            $region29: #{_lambda_.3} parent=27 // pred_check
              _
            $region30: #{_lambda_.3} parent=27 // pred_check_branch
              %178 = sbr.rel target = $region32
            $region31: #{_lambda_.3} parent=27 // pred_region
              // Predicated region
              $region44: #{_lambda_.3} parent=31 // pred_check
                _
              $region45: #{_lambda_.3} parent=31 // pred_check_branch
                %203 = sbr.rel (0) target = $region47
              $region46: #{_lambda_.3} parent=31 // pred_region
                loop: start=0, step=1, limit=1
                $region48: #{_lambda_.3} parent=46 // loop_pre_header
                  _
                $region49: #{_lambda_.3} parent=46 // loop_header
                  %s205 = sphi 0, %s209
                  %p206 = scmp.ge.s32.totalorder %s205, 1
                  %s210 = sphi %s174, %s174
                  %s211 = sphi %s170, %s170
                $region50: #{_lambda_.3} parent=46 // loop_header_branch
                  %208 = sbr.rel (%p206) target = $region54
                $region51: #{_lambda_.3} parent=46 // loop_body
                  _
                $region52: #{_lambda_.3} parent=46 // loop_footer
                  %s209 = sadd.s32 1, %s205
                $region53: #{_lambda_.3} parent=46 // loop_footer_branch
                  %204 = sbr.rel target = $region49
                $region54: #{_lambda_.3} parent=46 // loop_exit
                  _
                loop: start=0, step=1, limit=1
                $region55: #{_lambda_.3} parent=46 // loop_pre_header
                  _
                $region56: #{_lambda_.3} parent=46 // loop_header
                  %s214 = sphi 0, %s218
                  %p215 = scmp.ge.s32.totalorder %s214, 1
                  %s219 = sphi %s174, %s174
                  %s220 = sphi %s170, %s170
                $region57: #{_lambda_.3} parent=46 // loop_header_branch
                  %217 = sbr.rel (%p215) target = $region61
                $region58: #{_lambda_.3} parent=46 // loop_body
                  %v221 = vld [vmem:[%s219] sm:$0xf]
                  %222 = vst [vmem:[%s220] sm:$0xf] %v221
                  %v223 = vld [vmem:[%s219 + $0x8] sm:$0xf]
                  %224 = vst [vmem:[%s220 + $0x4] sm:$0xf] %v223
                  %v225 = vld [vmem:[%s219 + $0x10] sm:$0xf]
                  %226 = vst [vmem:[%s220 + $0x8] sm:$0xf] %v225
                  %v227 = vld [vmem:[%s219 + $0x18] sm:$0xf]
                  %228 = vst [vmem:[%s220 + $0xc] sm:$0xf] %v227
                  %v229 = vld [vmem:[%s219 + $0x20] sm:$0xf]
                  %230 = vst [vmem:[%s220 + $0x10] sm:$0xf] %v229
                  %v231 = vld [vmem:[%s219 + $0x28] sm:$0xf]
                  %232 = vst [vmem:[%s220 + $0x14] sm:$0xf] %v231
                $region59: #{_lambda_.3} parent=46 // loop_footer
                  %s218 = sadd.s32 1, %s214
                $region60: #{_lambda_.3} parent=46 // loop_footer_branch
                  %213 = sbr.rel target = $region56
                $region61: #{_lambda_.3} parent=46 // loop_exit
                  _
              $region47: #{_lambda_.3} parent=31 // pred_fallthru
                _
            $region32: #{_lambda_.3} parent=27 // pred_fallthru
              _
            // Predicated region
            $region33: #{_lambda_.3} parent=27 // pred_check
              _
            $region34: #{_lambda_.3} parent=27 // pred_check_branch
              %180 = sbr.rel (0) target = $region36
            $region35: #{_lambda_.3} parent=27 // pred_region
              loop: start=0, step=1, limit=1
              $region37: #{_lambda_.3} parent=35 // loop_pre_header
                _
              $region38: #{_lambda_.3} parent=35 // loop_header
                %s183 = sphi 0, %s187
                %p184 = scmp.ge.s32.totalorder %s183, 1
                %s188 = sphi %s174, %s174
                %s189 = sphi %s170, %s170
              $region39: #{_lambda_.3} parent=35 // loop_header_branch
                %186 = sbr.rel (%p184) target = $region43
              $region40: #{_lambda_.3} parent=35 // loop_body
                %v190 = vld [vmem:[%s188] sm:$0xf]
                %191 = vst [vmem:[%s189] sm:$0xf] %v190
                %v192 = vld [vmem:[%s188 + $0x8] sm:$0xf]
                %193 = vst [vmem:[%s189 + $0x4] sm:$0xf] %v192
                %v194 = vld [vmem:[%s188 + $0x10] sm:$0xf]
                %195 = vst [vmem:[%s189 + $0x8] sm:$0xf] %v194
                %v196 = vld [vmem:[%s188 + $0x18] sm:$0xf]
                %197 = vst [vmem:[%s189 + $0xc] sm:$0xf] %v196
                %v198 = vld [vmem:[%s188 + $0x20] sm:$0xf]
                %199 = vst [vmem:[%s189 + $0x10] sm:$0xf] %v198
                %v200 = vld [vmem:[%s188 + $0x28] sm:$0xf]
                %201 = vst [vmem:[%s189 + $0x14] sm:$0xf] %v200
              $region41: #{_lambda_.3} parent=35 // loop_footer
                %s187 = sadd.s32 1, %s183
              $region42: #{_lambda_.3} parent=35 // loop_footer_branch
                %182 = sbr.rel target = $region38
              $region43: #{_lambda_.3} parent=35 // loop_exit
                _
            $region36: #{_lambda_.3} parent=27 // pred_fallthru
              _
          $region28: #{_lambda_.3} parent=23 // pred_fallthru
            _
          %233 = vnop
        $region24: #{_lambda_.3} parent=19 // pred_fallthru
          _
        // Predicated region
        $region62: #{_lambda_.3} parent=19 // pred_check
          %p234 = pneg %p104
        $region63: #{_lambda_.3} parent=19 // pred_check_branch
          %236 = sbr.rel (%p234) target = $region65
        $region64: #{_lambda_.3} parent=19 // pred_region
          %p237 = scmp.lt.s32.totalorder %s16, 1
          %s238 = scalar_select %p237, %s16, 1
          %p239 = scmp.lt.s32.totalorder %s17, 0
          %s240 = scalar_select %p239, %s17, 0
          %s241 = smul.addr %s240, 2
          %s242 = smul.addr %s238, 2
          %s243 = sadd.s32 %s241, %s242
          %s244 = smul.addr %s243, 4
          %s245 = scalar_lea.vmem %s2, %s244
        $region65: #{_lambda_.3} parent=19 // pred_fallthru
          _
      $region20: #{_lambda_.3} parent=5 // pred_fallthru
        _
      %p246 = scmp.le.s32.totalorder 1, %s9
      %p247 = scmp.lt.s32.totalorder %s9, 5
      %p248 = pnand %p246, %p247
      %p249 = pneg %p248
      // Predicated region
      $region66: #{_lambda_.3} parent=5 // pred_check
        _
      $region67: #{_lambda_.3} parent=5 // pred_check_branch
        %251 = sbr.rel (%p248) target = $region69
      $region68: #{_lambda_.3} parent=5 // pred_region
        %s252 = ssub.s32 %s9, 1
        %s253 = sand.u32 %s43, 1
        %s254 = sand.u32 %s43, 1
        %s255 = smul.addr %s254, 24
        %s256 = scalar_lea.vmem [#allocation4], %s255
        // Predicated region
        $region70: #{_lambda_.3} parent=68 // pred_check
          %p257 = pneg %p56
        $region71: #{_lambda_.3} parent=68 // pred_check_branch
          %259 = sbr.rel (%p257) target = $region73
        $region72: #{_lambda_.3} parent=68 // pred_region
          _
        $region73: #{_lambda_.3} parent=68 // pred_fallthru
          _
        %s260 = sand.u32 %s43, 1
        %s261 = sand.u32 %s43, 1
        %s262 = smul.addr %s261, 24
        %s263 = scalar_lea.vmem [#allocation4], %s262
        %p264 = pneg %p56
        %p265 = pneg %p53
        %p266 = scmp.lt.s32.totalorder %s20, 0
        %s267 = scalar_select %p266, %s20, 0
        %s268 = smul.addr %s267, 4
        %s269 = scalar_lea.vmem %s1, %s268
        %p270 = pneg %p82
        %p271 = pneg %p79
        %p272 = scmp.lt.s32.totalorder %s19, 1
        %s273 = scalar_select %p272, %s19, 1
        %p274 = scmp.lt.s32.totalorder %s20, 0
        %s275 = scalar_select %p274, %s20, 0
        %s276 = smul.addr %s275, 2
        %s277 = smul.addr %s273, 2
        %s278 = sadd.s32 %s276, %s277
        %s279 = smul.addr %s278, 4
        %s280 = scalar_lea.vmem %s2, %s279
        %p281 = pneg %p110
        %p282 = pneg %p107
        %p283 = pneg %p138
        %p284 = pneg %p135
        %p285 = scmp.lt.s32.totalorder %s19, 1
        %s286 = scalar_select %p285, %s19, 1
        %p287 = scmp.lt.s32.totalorder %s20, 0
        %s288 = scalar_select %p287, %s20, 0
        %s289 = smul.addr %s288, 2
        %s290 = smul.addr %s286, 2
        %s291 = sadd.s32 %s289, %s290
        %s292 = smul.addr %s291, 4
        %s293 = scalar_lea.vmem %s3, %s292
        %p294 = scmp.lt.s32.totalorder %s20, 0
        %s295 = scalar_select %p294, %s20, 0
        %s296 = smul.addr %s295, 4
        %s297 = scalar_lea.vmem %s1, %s296
        %p298 = scmp.lt.s32.totalorder %s19, 1
        %s299 = scalar_select %p298, %s19, 1
        %p300 = scmp.lt.s32.totalorder %s20, 0
        %s301 = scalar_select %p300, %s20, 0
        %s302 = smul.addr %s301, 2
        %s303 = smul.addr %s299, 2
        %s304 = sadd.s32 %s302, %s303
        %s305 = smul.addr %s304, 4
        %s306 = scalar_lea.vmem %s2, %s305
        %p307 = scmp.lt.s32.totalorder %s19, 1
        %s308 = scalar_select %p307, %s19, 1
        %p309 = scmp.lt.s32.totalorder %s20, 0
        %s310 = scalar_select %p309, %s20, 0
        %s311 = smul.addr %s310, 2
        %s312 = smul.addr %s308, 2
        %s313 = sadd.s32 %s311, %s312
        %s314 = smul.addr %s313, 4
        %s315 = scalar_lea.vmem %s3, %s314
        %p317 = scmp.eq.s32.totalorder %s21, 0
        // Predicated region
        $region74: #{_lambda_.3} parent=68 // pred_check
          %p318 = pneg %p317
        $region75: #{_lambda_.3} parent=68 // pred_check_branch
          %320 = sbr.rel (%p318) target = $region77
        $region76: #{_lambda_.3} parent=68 // pred_region
          %321 = vst [vmem:[#allocation2] sm:$0xff] 0.0
          %322 = vst [vmem:[#allocation3] sm:$0xff] 0.0
        $region77: #{_lambda_.3} parent=68 // pred_fallthru
          _
        %v323 = vld [vmem:[%s297] sm:$0xf]
        %v324 = vld [vmem:[%s256] sm:$0xf]
        %v325 = vld [vmem:[%s256 + $0x4] sm:$0xf]
        %v326 = vld [vmem:[%s256 + $0x8] sm:$0xf]
        %v327 = vld [vmem:[%s256 + $0xc] sm:$0xf]
        %v328 = vld [vmem:[%s256 + $0x10] sm:$0xf]
        %v329 = vld [vmem:[%s256 + $0x14] sm:$0xf]
        %v336 = vunpack.c.l.b16 %v324
        %v337 = vunpack.c.l.b16 %v325
        %v338 = vunpack.c.l.b16 %v326
        %v339 = vunpack.c.l.b16 %v327
        %v340 = vunpack.c.l.b16 %v328
        %v341 = vunpack.c.l.b16 %v329
        %v342 = vpack.c.b16 %v337, %v336
        %v343 = vpack.c.b16 %v339, %v338
        %v344 = vpack.c.b16 %v341, %v340
        %vm348 = vcmask 392192
        %v350 = vsel %vm348, %v323, 0
        %352 = vmatprep.subr.bf16.mxu0 0
        %353 = vmatpush1.bf16.msra.mxu0 %v342
        %354 = vmatprep.subr.bf16.mxu0 0
        %355 = vmatpush1.bf16.msra.mxu0 %v343
        %356 = vmatprep.subr.bf16.mxu0 0
        %357 = vmatpush1.bf16.msra.mxu0 %v344
        %358 = vmatprep.subr.bf16.mxu0 0
        %359 = vmatpush1.bf16.msra.mxu0 0
        %360 = vmatprep.subr.bf16.mxu0 0
        %361 = vmatpush1.bf16.msra.mxu0 0
        %362 = vmatprep.subr.bf16.mxu0 0
        %363 = vmatpush1.bf16.msra.mxu0 0
        %364 = vmatprep.subr.bf16.mxu0 0
        %365 = vmatpush1.bf16.msra.mxu0 0
        %366 = vmatprep.subr.bf16.mxu0 0
        %367 = vmatpush1.bf16.msra.mxu0 0
        %368 = vmatprep.subr.bf16.mxu0 0
        %369 = vmatpush1.bf16.msra.mxu0 0
        %370 = vmatprep.subr.bf16.mxu0 0
        %371 = vmatpush1.bf16.msra.mxu0 0
        %372 = vmatprep.subr.bf16.mxu0 0
        %373 = vmatpush1.bf16.msra.mxu0 0
        %374 = vmatprep.subr.bf16.mxu0 0
        %375 = vmatpush1.bf16.msra.mxu0 0
        %376 = vmatprep.subr.bf16.mxu0 0
        %377 = vmatpush1.bf16.msra.mxu0 0
        %378 = vmatprep.subr.bf16.mxu0 0
        %379 = vmatpush1.bf16.msra.mxu0 0
        %380 = vmatprep.subr.bf16.mxu0 0
        %381 = vmatpush1.bf16.msra.mxu0 0
        %382 = vmatprep.subr.bf16.mxu0 0
        %383 = vmatpush1.bf16.msra.mxu0 0
        %384 = vmatprep.mubr.bf16.mxu0 0
        %385 = vmatmul.mubr.bf16.gmra.mrb[0].mxu0 %v350
        %v386 = vpop.f32.mrb[0].mxu0
        %v387 = vadd.f32 0.0, %v386
        %v388 = vpop.f32.mrb[0].mxu0
        %v389 = vpop.f32.mrb[0].mxu0
        %v390 = vpop.f32.mrb[0].mxu0
        %391 = vdwg.mxu0
        %v392 = vmul.f32 %v387, %v387
        %v393 = vld [vmem:[#allocation2] sm:$0xff]
        %v394 = vadd.f32 %v393, %v387
        %395 = vst [vmem:[#allocation2] sm:$0xff] %v394
        %v396 = vld [vmem:[#allocation3] sm:$0xff]
        %v397 = vadd.f32 %v396, %v392
        %398 = vst [vmem:[#allocation3] sm:$0xff] %v397
        %s399 = smul.u32 %s21, 128
        %v400 = vpack.c.bf16 %v387, %v387
        %s401 = sshra.s32 %s399, 7
        %s402 = sand.u32 %s399, 127
        %s403 = smul.addr %s401, 4
        %s404 = scalar_lea.vmem %s315, %s403
        %405 = vst [vmem:[%s404] sm:$0xf] %v400
        %p406 = scmp.eq.s32.totalorder %s21, 1
        // Predicated region
        $region78: #{_lambda_.3} parent=68 // pred_check
          %p407 = pneg %p406
        $region79: #{_lambda_.3} parent=68 // pred_check_branch
          %409 = sbr.rel (%p407) target = $region81
        $region80: #{_lambda_.3} parent=68 // pred_region
          %v410 = vld [vmem:[#allocation2] sm:$0xff]
          %411 = vadd.xlane.f32.xlu0 %v410
          %v412 = vpop.xlane.xlu0 %411
          %v413 = vmul.f32 %v412, 0.004
          %v414 = vld [vmem:[#allocation3] sm:$0xff]
          %415 = vadd.xlane.f32.xlu0 %v414
          %v416 = vpop.xlane.xlu0 %415
          %v417 = vmul.f32 %v416, 0.004
          %v418 = vmul.f32 %v413, %v413
          %v419 = vsub.f32 %v417, %v418
          %v420 = vmax.f32 %v419, 0.0
          %v421 = vadd.f32 %v420, 1e-05
          %v422 = vrsqrt.pop %v421
          %v423 = vld [vmem:[%s315] sm:$0xff]
          %v424 = vunpack.c.l.bf16 %v423
          %v425 = vunpack.c.h.bf16 %v423
          %v426 = vsub.f32 %v424, %v413
          %v427 = vsub.f32 %v425, %v413
          %v428 = vmul.f32 %v426, %v422
          %v429 = vmul.f32 %v427, %v422
          %v430 = vld [vmem:[%s306] sm:$0xff]
          %v431 = vunpack.c.l.bf16 %v430
          %v432 = vunpack.c.h.bf16 %v430
          %v433 = vadd.f32 %v428, %v431
          %v434 = vadd.f32 %v429, %v432
          %v435 = vmax.f32 %v433, 0.0
          %v436 = vmax.f32 %v434, 0.0
          %v437 = vlaneseq
          %v438 = vand.u32 %v437, 127
          %v439 = vadd.s32 %v438, 128
          %vm440 = vcmp.lt.s32.totalorder %v438, 250
          %vm441 = vcmp.lt.s32.totalorder %v439, 250
          %v442 = vsel %vm440, %v435, 0.0
          %v443 = vsel %vm441, %v436, 0.0
          %v444 = vpack.c.bf16 %v442, %v442
          %v445 = vpack.c.bf16 %v443, %v443
          %v448 = vunpack.c.l.b16 %v444
          %v449 = vunpack.c.l.b16 %v445
          %v450 = vpack.c.b16 %v449, %v448
          %452 = vst [vmem:[%s315] sm:$0xff] %v450
        $region81: #{_lambda_.3} parent=68 // pred_fallthru
          _
        %p453 = scmp.lt.s32.totalorder %s19, 1
        %s454 = scalar_select %p453, %s19, 1
        %p455 = scmp.lt.s32.totalorder %s20, 0
        %s456 = scalar_select %p455, %s20, 0
        %s457 = smul.addr %s456, 2
        %s458 = smul.addr %s454, 2
        %s459 = sadd.s32 %s457, %s458
        %s460 = smul.addr %s459, 4
        %s461 = scalar_lea.vmem %s3, %s460
        // Predicated region
        $region82: #{_lambda_.3} parent=68 // pred_check
          %p462 = pneg %p135
        $region83: #{_lambda_.3} parent=68 // pred_check_branch
          %464 = sbr.rel (%p462) target = $region85
        $region84: #{_lambda_.3} parent=68 // pred_region
          _
        $region85: #{_lambda_.3} parent=68 // pred_fallthru
          _
      $region69: #{_lambda_.3} parent=5 // pred_fallthru
        _
      %p465 = scmp.le.s32.totalorder 2, %s9
      // Predicated region
      $region86: #{_lambda_.3} parent=5 // pred_check
        %p466 = pneg %p465
      $region87: #{_lambda_.3} parent=5 // pred_check_branch
        %468 = sbr.rel (%p466) target = $region89
      $region88: #{_lambda_.3} parent=5 // pred_region
        %s469 = ssub.s32 %s9, 2
        // Predicated region
        $region90: #{_lambda_.3} parent=88 // pred_check
          %p470 = pneg %p141
        $region91: #{_lambda_.3} parent=88 // pred_check_branch
          %472 = sbr.rel (%p470) target = $region93
        $region92: #{_lambda_.3} parent=88 // pred_region
          %p473 = scmp.lt.s32.totalorder %s22, 1
          %s474 = scalar_select %p473, %s22, 1
          %p475 = scmp.lt.s32.totalorder %s23, 0
          %s476 = scalar_select %p475, %s23, 0
          %s477 = smul.addr %s476, 2
          %s478 = smul.addr %s474, 2
          %s479 = sadd.s32 %s477, %s478
          %s480 = smul.addr %s479, 4
          %s481 = scalar_lea.vmem %s3, %s480
        $region93: #{_lambda_.3} parent=88 // pred_fallthru
          _
      $region89: #{_lambda_.3} parent=5 // pred_fallthru
        _
    $region6: #{_lambda_.3} parent=1 // loop_footer
      %s13 = sadd.s32 1, %s9
    $region7: #{_lambda_.3} parent=1 // loop_footer_branch
      %8 = sbr.rel target = $region3
    $region8: #{_lambda_.3} parent=1 // loop_exit
      _

</llo_original>
